<compile_context>
chip_gen: v6e
topology: v6e:2x2x1
jax: 0.10.0
libtpu: 0.0.40
codegen_flags: <defaults>
</compile_context>

<pallas_src>
import functools

import jax
import jax.numpy as jnp
from jax.experimental import pallas as pl
from jax.experimental.pallas import tpu as pltpu


# ----------------------------- Pallas kernel -------------------------------
def decoder_kernel(c_ref,
                   w0_ref, b0_ref,
                   w1_ref, b1_ref,
                   w2_ref, b2_ref,
                   w3_ref, b3_ref,
                   out_ref):
    """One grid step = one fc_out column tile.

    The three hidden layers are recomputed every step; at B<=16 this is a few
    MFLOP and invisible next to the w3 tile DMA.  Recomputing removes the
    cross-iteration scratch dependency so the column axis can be "parallel"
    (v7x 2-TC split) without any correctness hazard.
    """
    # fc_0 (c already bf16)
    h = jnp.dot(c_ref[...], w0_ref[...],
                preferred_element_type=jnp.float32) + b0_ref[...]
    # fc_1(relu(.))
    h = jnp.maximum(h, 0.0).astype(jnp.bfloat16)
    h = jnp.dot(h, w1_ref[...],
                preferred_element_type=jnp.float32) + b1_ref[...]
    # fc_2(relu(.))
    h = jnp.maximum(h, 0.0).astype(jnp.bfloat16)
    h = jnp.dot(h, w2_ref[...],
                preferred_element_type=jnp.float32) + b2_ref[...]
    # fc_out(relu(.)) -- column tile j of the output (no activation)
    h = jnp.maximum(h, 0.0).astype(jnp.bfloat16)
    out = jnp.dot(h, w3_ref[...],
                  preferred_element_type=jnp.float32) + b3_ref[...]
    out_ref[...] = out.astype(out_ref.dtype)


# ------------------------------- wrapper ------------------------------------
def _round_up(x, m):
    return ((x + m - 1) // m) * m


def _pick_tile_n(out_dim_p, max_tn=1536):
    """Largest multiple of 128 (<= max_tn) dividing out_dim_p, preferring a
    split into >= 2 tiles (DMA overlap on v5e, 2-TC split on v7x)."""
    single = None
    for tn in range(min(max_tn, out_dim_p), 127, -128):
        if out_dim_p % tn == 0:
            if out_dim_p // tn >= 2:
                return tn
            if single is None:
                single = tn
    return single if single is not None else out_dim_p


@functools.partial(jax.jit, static_argnames=("dim", "n_points"))
def decoder_forward(c, params, *, dim, n_points):
    """c: (B, c_dim) f32  ->  points: (B, n_points, dim) f32."""
    B, c_dim = c.shape
    out_dim = dim * n_points
    w0, b0, w1, b1, w2, b2, w3, b3 = params
    H = w0.shape[1]

    # Pad batch to a full bf16 sublane-packed tile (16 rows); pre-cast to bf16.
    B_pad = max(16, _round_up(B, 16))
    c_bf = c.astype(jnp.bfloat16)
    if B_pad != B:
        c_bf = jnp.pad(c_bf, ((0, B_pad - B), (0, 0)))

    # Pad the fc_out column dim to a multiple of 128 -> lane-dense stores.
    out_dim_p = _round_up(out_dim, 128)
    if out_dim_p != out_dim:
        w3 = jnp.pad(w3, ((0, 0), (0, out_dim_p - out_dim)))
        b3 = jnp.pad(b3, ((0, 0), (0, out_dim_p - out_dim)))

    TN = _pick_tile_n(out_dim_p)
    n_tiles = out_dim_p // TN

    def resident(shape):
        nd = len(shape)
        return pl.BlockSpec(shape, lambda j: (0,) * nd)

    in_specs = [
        resident((B_pad, c_dim)),                  # c (bf16, stays in VMEM)
        resident((c_dim, H)), resident((1, H)),    # fc_0
        resident((H, H)),     resident((1, H)),    # fc_1
        resident((H, H)),     resident((1, H)),    # fc_2
        pl.BlockSpec((H, TN), lambda j: (0, j)),   # fc_out weight tile
        pl.BlockSpec((1, TN), lambda j: (0, j)),   # fc_out bias tile
    ]
    out_specs = pl.BlockSpec((B_pad, TN), lambda j: (0, j))

    flops = (2 * B_pad * n_tiles * (c_dim * H + 2 * H * H)
             + 2 * B_pad * H * out_dim_p)
    bytes_accessed = (
        B_pad * c_dim * 2                                    # bf16 input
        + (w0.size + w1.size + w2.size + w3.size) * 2        # bf16 weights
        + (b0.size + b1.size + b2.size + b3.size) * 4        # f32 biases
        + B_pad * out_dim_p * 4                              # f32 output
    )
    cost = pl.CostEstimate(flops=int(flops), transcendentals=0,
                           bytes_accessed=int(bytes_accessed))

    flat = pl.pallas_call(
        decoder_kernel,
        out_shape=jax.ShapeDtypeStruct((B_pad, out_dim_p), jnp.float32),
        grid_spec=pltpu.PrefetchScalarGridSpec(
            num_scalar_prefetch=0,
            grid=(n_tiles,),
            in_specs=in_specs,
            out_specs=out_specs,
        ),
        compiler_params=pltpu.CompilerParams(
            # No cross-iteration state -> column tiles are fully independent.
            dimension_semantics=("parallel",),
        ),
        cost_estimate=cost,
    )(c_bf, w0, b0, w1, b1, w2, b2, w3, b3)

    # glue: drop padding, reshape (B, dim*n_points) -> (B, n_points, dim)
    return flat[:B, :out_dim].reshape(B, n_points, dim)


def init_params(key, c_dim, hidden, out_dim):
    """Synthetic params: weights (in, out) in bf16, biases (1, out) in f32."""
    ks = jax.random.split(key, 8)

    def lin(kw, kb, fan_in, fan_out):
        scale = 1.0 / jnp.sqrt(fan_in)
        w = jax.random.uniform(kw, (fan_in, fan_out), jnp.float32, -scale, scale)
        b = jax.random.uniform(kb, (1, fan_out), jnp.float32, -scale, scale)
        return w.astype(jnp.bfloat16), b

    w0, b0 = lin(ks[0], ks[1], c_dim, hidden)
    w1, b1 = lin(ks[2], ks[3], hidden, hidden)
    w2, b2 = lin(ks[4], ks[5], hidden, hidden)
    w3, b3 = lin(ks[6], ks[7], hidden, out_dim)
    return (w0, b0, w1, b1, w2, b2, w3, b3)


def decoder_reference(c, params):
    """Pure-JAX reference with the same bf16-weight / f32-accumulate math."""
    w0, b0, w1, b1, w2, b2, w3, b3 = params

    def lin(x, w, b):
        return jnp.dot(x.astype(jnp.bfloat16), w,
                       preferred_element_type=jnp.float32) + b

    h = lin(c, w0, b0)
    h = lin(jnp.maximum(h, 0.0), w1, b1)
    h = lin(jnp.maximum(h, 0.0), w2, b2)
    h = lin(jnp.maximum(h, 0.0), w3, b3)
    return h


if __name__ == "__main__":
    # small, module-consistent shapes
    batch = 2
    dim = 3
    c_dim = 128
    hidden = 512
    n_points = 256          # smaller than the default 1024 to keep the demo light
    out_dim = dim * n_points

    key = jax.random.PRNGKey(0)
    k_in, k_par = jax.random.split(key)

    c = jax.random.normal(k_in, (batch, c_dim), jnp.float32)
    params = init_params(k_par, c_dim, hidden, out_dim)

    points = decoder_forward(c, params, dim=dim, n_points=n_points)
    points = jax.block_until_ready(points)

    assert points.shape == (batch, n_points, dim), points.shape

    ref = decoder_reference(c, params).reshape(batch, n_points, dim)
    max_err = float(jnp.max(jnp.abs(points - ref)))
    assert jnp.allclose(points, ref, atol=2e-3, rtol=2e-3), max_err

    print("KERNEL_OK")
</pallas_src>

<mosaic_0001>
module attributes {stable_mosaic.version = 11 : i64} {
  func.func @decoder_kernel(%arg0: i32, %arg1: memref<16x128xbf16, #tpu.memory_space<vmem>>, %arg2: memref<128x512xbf16, #tpu.memory_space<vmem>>, %arg3: memref<1x512xf32, #tpu.memory_space<vmem>>, %arg4: memref<512x512xbf16, #tpu.memory_space<vmem>>, %arg5: memref<1x512xf32, #tpu.memory_space<vmem>>, %arg6: memref<512x512xbf16, #tpu.memory_space<vmem>>, %arg7: memref<1x512xf32, #tpu.memory_space<vmem>>, %arg8: memref<512x384xbf16, #tpu.memory_space<vmem>>, %arg9: memref<1x384xf32, #tpu.memory_space<vmem>>, %arg10: memref<16x384xf32, #tpu.memory_space<vmem>>) attributes {dimension_semantics = [#tpu.dimension_semantics<parallel>], iteration_bounds = array<i64: 2>, scalar_prefetch = 0 : i64, scratch_operands = 0 : i64, tpu.core_type = #tpu.core_type<tc>, window_params = [{pipeline_mode = #tpu.pipeline_mode<synchronous>, transform_indices = @transform_0, window_bounds = array<i64: 16, 128>}, {pipeline_mode = #tpu.pipeline_mode<synchronous>, transform_indices = @transform_1, window_bounds = array<i64: 128, 512>}, {pipeline_mode = #tpu.pipeline_mode<synchronous>, transform_indices = @transform_2, window_bounds = array<i64: 1, 512>}, {pipeline_mode = #tpu.pipeline_mode<synchronous>, transform_indices = @transform_3, window_bounds = array<i64: 512, 512>}, {pipeline_mode = #tpu.pipeline_mode<synchronous>, transform_indices = @transform_4, window_bounds = array<i64: 1, 512>}, {pipeline_mode = #tpu.pipeline_mode<synchronous>, transform_indices = @transform_5, window_bounds = array<i64: 512, 512>}, {pipeline_mode = #tpu.pipeline_mode<synchronous>, transform_indices = @transform_6, window_bounds = array<i64: 1, 512>}, {transform_indices = @transform_7, window_bounds = array<i64: 512, 384>}, {transform_indices = @transform_8, window_bounds = array<i64: 1, 384>}, {transform_indices = @transform_9, window_bounds = array<i64: 16, 384>}]} {
    %c0 = arith.constant 0 : index
    %c0_0 = arith.constant 0 : index
    %0 = vector.load %arg1[%c0, %c0_0] : memref<16x128xbf16, #tpu.memory_space<vmem>>, vector<16x128xbf16>
    %c0_1 = arith.constant 0 : index
    %c0_2 = arith.constant 0 : index
    %1 = vector.load %arg2[%c0_1, %c0_2] : memref<128x512xbf16, #tpu.memory_space<vmem>>, vector<128x512xbf16>
    %cst = arith.constant dense<0.000000e+00> : vector<16x512xf32>
    %2 = tpu.matmul %0, %1, %cst {dimension_numbers = #tpu.dot_dimension_numbers<[1], [0], [0], [1], [0, 0, 1, 1], [], []>} : vector<16x128xbf16>, vector<128x512xbf16>, vector<16x512xf32> -> vector<16x512xf32>
    %c0_3 = arith.constant 0 : index
    %c0_4 = arith.constant 0 : index
    %3 = vector.load %arg3[%c0_3, %c0_4] : memref<1x512xf32, #tpu.memory_space<vmem>>, vector<1x512xf32>
    %4 = vector.broadcast %3 : vector<1x512xf32> to vector<16x512xf32>
    %5 = arith.addf %2, %4 : vector<16x512xf32>
    %cst_5 = arith.constant 0.000000e+00 : f32
    %6 = vector.broadcast %cst_5 : f32 to vector<16x512xf32>
    %7 = arith.maximumf %5, %6 : vector<16x512xf32>
    %8 = arith.truncf %7 : vector<16x512xf32> to vector<16x512xbf16>
    %c0_6 = arith.constant 0 : index
    %c0_7 = arith.constant 0 : index
    %9 = vector.load %arg4[%c0_6, %c0_7] : memref<512x512xbf16, #tpu.memory_space<vmem>>, vector<512x512xbf16>
    %cst_8 = arith.constant dense<0.000000e+00> : vector<16x512xf32>
    %10 = tpu.matmul %8, %9, %cst_8 {dimension_numbers = #tpu.dot_dimension_numbers<[1], [0], [0], [1], [0, 0, 1, 1], [], []>} : vector<16x512xbf16>, vector<512x512xbf16>, vector<16x512xf32> -> vector<16x512xf32>
    %c0_9 = arith.constant 0 : index
    %c0_10 = arith.constant 0 : index
    %11 = vector.load %arg5[%c0_9, %c0_10] : memref<1x512xf32, #tpu.memory_space<vmem>>, vector<1x512xf32>
    %12 = vector.broadcast %11 : vector<1x512xf32> to vector<16x512xf32>
    %13 = arith.addf %10, %12 : vector<16x512xf32>
    %cst_11 = arith.constant 0.000000e+00 : f32
    %14 = vector.broadcast %cst_11 : f32 to vector<16x512xf32>
    %15 = arith.maximumf %13, %14 : vector<16x512xf32>
    %16 = arith.truncf %15 : vector<16x512xf32> to vector<16x512xbf16>
    %c0_12 = arith.constant 0 : index
    %c0_13 = arith.constant 0 : index
    %17 = vector.load %arg6[%c0_12, %c0_13] : memref<512x512xbf16, #tpu.memory_space<vmem>>, vector<512x512xbf16>
    %cst_14 = arith.constant dense<0.000000e+00> : vector<16x512xf32>
    %18 = tpu.matmul %16, %17, %cst_14 {dimension_numbers = #tpu.dot_dimension_numbers<[1], [0], [0], [1], [0, 0, 1, 1], [], []>} : vector<16x512xbf16>, vector<512x512xbf16>, vector<16x512xf32> -> vector<16x512xf32>
    %c0_15 = arith.constant 0 : index
    %c0_16 = arith.constant 0 : index
    %19 = vector.load %arg7[%c0_15, %c0_16] : memref<1x512xf32, #tpu.memory_space<vmem>>, vector<1x512xf32>
    %20 = vector.broadcast %19 : vector<1x512xf32> to vector<16x512xf32>
    %21 = arith.addf %18, %20 : vector<16x512xf32>
    %cst_17 = arith.constant 0.000000e+00 : f32
    %22 = vector.broadcast %cst_17 : f32 to vector<16x512xf32>
    %23 = arith.maximumf %21, %22 : vector<16x512xf32>
    %24 = arith.truncf %23 : vector<16x512xf32> to vector<16x512xbf16>
    %c0_18 = arith.constant 0 : index
    %c0_19 = arith.constant 0 : index
    %25 = vector.load %arg8[%c0_18, %c0_19] : memref<512x384xbf16, #tpu.memory_space<vmem>>, vector<512x384xbf16>
    %cst_20 = arith.constant dense<0.000000e+00> : vector<16x384xf32>
    %26 = tpu.matmul %24, %25, %cst_20 {dimension_numbers = #tpu.dot_dimension_numbers<[1], [0], [0], [1], [0, 0, 1, 1], [], []>} : vector<16x512xbf16>, vector<512x384xbf16>, vector<16x384xf32> -> vector<16x384xf32>
    %c0_21 = arith.constant 0 : index
    %c0_22 = arith.constant 0 : index
    %27 = vector.load %arg9[%c0_21, %c0_22] : memref<1x384xf32, #tpu.memory_space<vmem>>, vector<1x384xf32>
    %28 = vector.broadcast %27 : vector<1x384xf32> to vector<16x384xf32>
    %29 = arith.addf %26, %28 : vector<16x384xf32>
    %c0_23 = arith.constant 0 : index
    %c0_24 = arith.constant 0 : index
    %30 = vector.load %arg10[%c0_23, %c0_24] : memref<16x384xf32, #tpu.memory_space<vmem>>, vector<16x384xf32>
    tpu.vector_store %arg10[%c0_23, %c0_24], %29 {strides = array<i32>} : memref<16x384xf32, #tpu.memory_space<vmem>>, vector<16x384xf32>,
    return
  }
  func.func @transform_0(%arg0: i32) -> (i32, i32) {
    %c0_i32 = arith.constant 0 : i32
    %c0_i32_0 = arith.constant 0 : i32
    %c0_i32_1 = arith.constant 0 : i32
    return %c0_i32, %c0_i32_0 : i32, i32
  }
  func.func @transform_1(%arg0: i32) -> (i32, i32) {
    %c0_i32 = arith.constant 0 : i32
    %c0_i32_0 = arith.constant 0 : i32
    %c0_i32_1 = arith.constant 0 : i32
    return %c0_i32, %c0_i32_0 : i32, i32
  }
  func.func @transform_2(%arg0: i32) -> (i32, i32) {
    %c0_i32 = arith.constant 0 : i32
    %c0_i32_0 = arith.constant 0 : i32
    %c0_i32_1 = arith.constant 0 : i32
    return %c0_i32, %c0_i32_0 : i32, i32
  }
  func.func @transform_3(%arg0: i32) -> (i32, i32) {
    %c0_i32 = arith.constant 0 : i32
    %c0_i32_0 = arith.constant 0 : i32
    %c0_i32_1 = arith.constant 0 : i32
    return %c0_i32, %c0_i32_0 : i32, i32
  }
  func.func @transform_4(%arg0: i32) -> (i32, i32) {
    %c0_i32 = arith.constant 0 : i32
    %c0_i32_0 = arith.constant 0 : i32
    %c0_i32_1 = arith.constant 0 : i32
    return %c0_i32, %c0_i32_0 : i32, i32
  }
  func.func @transform_5(%arg0: i32) -> (i32, i32) {
    %c0_i32 = arith.constant 0 : i32
    %c0_i32_0 = arith.constant 0 : i32
    %c0_i32_1 = arith.constant 0 : i32
    return %c0_i32, %c0_i32_0 : i32, i32
  }
  func.func @transform_6(%arg0: i32) -> (i32, i32) {
    %c0_i32 = arith.constant 0 : i32
    %c0_i32_0 = arith.constant 0 : i32
    %c0_i32_1 = arith.constant 0 : i32
    return %c0_i32, %c0_i32_0 : i32, i32
  }
  func.func @transform_7(%arg0: i32) -> (i32, i32) {
    %c0_i32 = arith.constant 0 : i32
    %c0_i32_0 = arith.constant 0 : i32
    return %c0_i32, %arg0 : i32, i32
  }
  func.func @transform_8(%arg0: i32) -> (i32, i32) {
    %c0_i32 = arith.constant 0 : i32
    %c0_i32_0 = arith.constant 0 : i32
    return %c0_i32, %arg0 : i32, i32
  }
  func.func @transform_9(%arg0: i32) -> (i32, i32) {
    %c0_i32 = arith.constant 0 : i32
    %c0_i32_0 = arith.constant 0 : i32
    return %c0_i32, %arg0 : i32, i32
  }
}

</mosaic_0001>

<llo_original>
// kernel: decoder_forward.1
$region0: #{decoder_forward.1}
  #allocation0 [shape = 'u32[]', space=smem, size = 0x4, offset = 0x4, fixed_abs, tag = 'smem constant byte address 0x4 - core index']
  #allocation1 [shape = 'u32[144,128]{1,0:T(1,128)}', space=vmem, size = 0x12000, scoped, tag = 'internal scratch']
  %s0 = inlined_call_operand.vmem [shape: bf16[16,128], index: 0, kind: input, shape index: {}]
  %s1 = inlined_call_operand.hbm [shape: bf16[128,512], index: 1, kind: input, shape index: {}]
  %s2 = inlined_call_operand.vmem [shape: f32[1,512], index: 2, kind: input, shape index: {}]
  %s3 = inlined_call_operand.hbm [shape: bf16[512,512], index: 3, kind: input, shape index: {}]
  %s4 = inlined_call_operand.vmem [shape: f32[1,512], index: 4, kind: input, shape index: {}]
  %s5 = inlined_call_operand.hbm [shape: bf16[512,512], index: 5, kind: input, shape index: {}]
  %s6 = inlined_call_operand.vmem [shape: f32[1,512], index: 6, kind: input, shape index: {}]
  %s7 = inlined_call_operand.hbm [shape: bf16[512,768], index: 7, kind: input, shape index: {}]
  %s8 = inlined_call_operand.vmem [shape: f32[1,768], index: 8, kind: input, shape index: {}]
  %s9 = inlined_call_operand.vmem [shape: f32[16,768], index: 9, kind: output, shape index: {}]
  %s10 = sld [smem:[#allocation0]]
  $region104: #{decoder_forward.1} parent=0
    _
  %s12 = ssub.s32 1, %s10
  %s13 = scalar_select 0, %s12, %s10
  $region1: #{decoder_forward.1} parent=0
    #allocation2 [shape = 'u8[131072]{0}', space=vmem, size = 0x20000, scoped, tag = 'input window, operand 1, single buffered']
    #allocation3 [shape = 's32[2]{0}', space=sflag, size = 0x8, scoped, tag = 'scoped memory for decoder_forward.1']
    #allocation4 [shape = 'u8[524288]{0}', space=vmem, size = 0x80000, scoped, tag = 'input window, operand 3, single buffered']
    #allocation5 [shape = 's32[1]{0}', space=sflag, size = 0x4, scoped, tag = 'scoped memory for decoder_forward.1']
    #allocation6 [shape = 'u8[524288]{0}', space=vmem, size = 0x80000, scoped, tag = 'input window, operand 5, single buffered']
    #allocation7 [shape = 'u8[786432]{0}', space=vmem, size = 0xc0000, scoped, tag = 'input window, operand 7']
    #allocation8 [shape = 's32[2]{0}', space=sflag, size = 0x8, scoped, tag = 'scoped memory for decoder_forward.1']
    #allocation9 [shape = 'u8[49152]{0}', space=vmem, size = 0xc000, scoped, tag = 'output window, operand 0']
    %14 = vsyncpa [#allocation3], 0
    %15 = vsyncpa [#allocation5], 0
    %16 = vsyncpa [#allocation8], 0
    %s17 = scalar_lea.sflag [#allocation8], 1
    %18 = vsyncpa %s17, 0
    loop: start=0, step=1, limit=4
    $region2: #{decoder_forward.1} parent=1 // loop_pre_header
      _
    $region3: #{decoder_forward.1} parent=1 // loop_header
      %s20 = sphi 0, %s24
      %p21 = scmp.ge.s32.totalorder %s20, 4
      %s28 = sphi 0, %s28
      %s30 = sphi 0, %s28
      %s31 = sphi 0, %s30
      %s45 = sphi 0, %s31
      %s49 = sphi 0, %s49
      %s51 = sphi 0, %s49
      %s52 = sphi 0, %s51
      %s66 = sphi 0, %s52
      %s70 = sphi 0, %s70
      %s72 = sphi 0, %s70
      %s73 = sphi 0, %s72
      %s87 = sphi 0, %s73
      %s91 = sphi 0, %s91
      %s93 = sphi 0, %s91
      %s94 = sphi 0, %s93
      %s108 = sphi 0, %s94
      %s112 = sphi 0, %s112
      %s114 = sphi 0, %s112
      %s115 = sphi 0, %s114
      %s129 = sphi 0, %s115
      %s133 = sphi 0, %s133
      %s135 = sphi 0, %s133
      %s136 = sphi 0, %s135
      %s150 = sphi 0, %s136
      %s154 = sphi 0, %s154
      %s156 = sphi 0, %s154
      %s157 = sphi 0, %s156
      %s171 = sphi 0, %s157
      %s177 = sphi 0, %s179
      %s180 = sphi 0, %s177
      %s181 = sphi 0, %s180
      %s197 = sphi 0, %s181
      %s203 = sphi 0, %s205
      %s206 = sphi 0, %s203
      %s207 = sphi 0, %s206
      %s223 = sphi 0, %s207
      %s229 = sphi 0, %s231
      %s232 = sphi 0, %s229
      %s233 = sphi 0, %s232
      %s249 = sphi 0, %s233
    $region4: #{decoder_forward.1} parent=1 // loop_header_branch
      %23 = sbr.rel (%p21) target = $region8
    $region5: #{decoder_forward.1} parent=1 // loop_body
      %s25 = ssub.s32 %s20, 1
      %s26 = ssub.s32 %s20, 2
      %s27 = sadd.s32 %s20, 1
      %s29 = sadd.s32 %s28, 1
      %p32 = scmp.eq.s32.totalorder %s20, 1
      %p33 = scmp.ne.s32.totalorder %s28, %s30
      %p34 = scmp.eq.s32.totalorder %s20, 0
      %p35 = por %p33, %p34
      %p36 = scmp.ne.s32.totalorder %s28, %s30
      %p37 = scmp.eq.s32.totalorder %s25, 1
      %p38 = por %p36, %p37
      %p39 = scmp.ne.s32.totalorder %s30, %s31
      %p40 = scmp.eq.s32.totalorder %s25, 0
      %p41 = por %p39, %p40
      %p42 = scmp.ne.s32.totalorder %s30, %s31
      %p43 = scmp.eq.s32.totalorder %s26, 1
      %p44 = por %p42, %p43
      %p46 = scmp.ne.s32.totalorder %s31, %s45
      %p47 = scmp.eq.s32.totalorder %s26, 0
      %p48 = por %p46, %p47
      %s50 = sadd.s32 %s49, 1
      %p53 = scmp.eq.s32.totalorder %s20, 1
      %p54 = scmp.ne.s32.totalorder %s49, %s51
      %p55 = scmp.eq.s32.totalorder %s20, 0
      %p56 = por %p54, %p55
      %p57 = scmp.ne.s32.totalorder %s49, %s51
      %p58 = scmp.eq.s32.totalorder %s25, 1
      %p59 = por %p57, %p58
      %p60 = scmp.ne.s32.totalorder %s51, %s52
      %p61 = scmp.eq.s32.totalorder %s25, 0
      %p62 = por %p60, %p61
      %p63 = scmp.ne.s32.totalorder %s51, %s52
      %p64 = scmp.eq.s32.totalorder %s26, 1
      %p65 = por %p63, %p64
      %p67 = scmp.ne.s32.totalorder %s52, %s66
      %p68 = scmp.eq.s32.totalorder %s26, 0
      %p69 = por %p67, %p68
      %s71 = sadd.s32 %s70, 1
      %p74 = scmp.eq.s32.totalorder %s20, 1
      %p75 = scmp.ne.s32.totalorder %s70, %s72
      %p76 = scmp.eq.s32.totalorder %s20, 0
      %p77 = por %p75, %p76
      %p78 = scmp.ne.s32.totalorder %s70, %s72
      %p79 = scmp.eq.s32.totalorder %s25, 1
      %p80 = por %p78, %p79
      %p81 = scmp.ne.s32.totalorder %s72, %s73
      %p82 = scmp.eq.s32.totalorder %s25, 0
      %p83 = por %p81, %p82
      %p84 = scmp.ne.s32.totalorder %s72, %s73
      %p85 = scmp.eq.s32.totalorder %s26, 1
      %p86 = por %p84, %p85
      %p88 = scmp.ne.s32.totalorder %s73, %s87
      %p89 = scmp.eq.s32.totalorder %s26, 0
      %p90 = por %p88, %p89
      %s92 = sadd.s32 %s91, 1
      %p95 = scmp.eq.s32.totalorder %s20, 1
      %p96 = scmp.ne.s32.totalorder %s91, %s93
      %p97 = scmp.eq.s32.totalorder %s20, 0
      %p98 = por %p96, %p97
      %p99 = scmp.ne.s32.totalorder %s91, %s93
      %p100 = scmp.eq.s32.totalorder %s25, 1
      %p101 = por %p99, %p100
      %p102 = scmp.ne.s32.totalorder %s93, %s94
      %p103 = scmp.eq.s32.totalorder %s25, 0
      %p104 = por %p102, %p103
      %p105 = scmp.ne.s32.totalorder %s93, %s94
      %p106 = scmp.eq.s32.totalorder %s26, 1
      %p107 = por %p105, %p106
      %p109 = scmp.ne.s32.totalorder %s94, %s108
      %p110 = scmp.eq.s32.totalorder %s26, 0
      %p111 = por %p109, %p110
      %s113 = sadd.s32 %s112, 1
      %p116 = scmp.eq.s32.totalorder %s20, 1
      %p117 = scmp.ne.s32.totalorder %s112, %s114
      %p118 = scmp.eq.s32.totalorder %s20, 0
      %p119 = por %p117, %p118
      %p120 = scmp.ne.s32.totalorder %s112, %s114
      %p121 = scmp.eq.s32.totalorder %s25, 1
      %p122 = por %p120, %p121
      %p123 = scmp.ne.s32.totalorder %s114, %s115
      %p124 = scmp.eq.s32.totalorder %s25, 0
      %p125 = por %p123, %p124
      %p126 = scmp.ne.s32.totalorder %s114, %s115
      %p127 = scmp.eq.s32.totalorder %s26, 1
      %p128 = por %p126, %p127
      %p130 = scmp.ne.s32.totalorder %s115, %s129
      %p131 = scmp.eq.s32.totalorder %s26, 0
      %p132 = por %p130, %p131
      %s134 = sadd.s32 %s133, 1
      %p137 = scmp.eq.s32.totalorder %s20, 1
      %p138 = scmp.ne.s32.totalorder %s133, %s135
      %p139 = scmp.eq.s32.totalorder %s20, 0
      %p140 = por %p138, %p139
      %p141 = scmp.ne.s32.totalorder %s133, %s135
      %p142 = scmp.eq.s32.totalorder %s25, 1
      %p143 = por %p141, %p142
      %p144 = scmp.ne.s32.totalorder %s135, %s136
      %p145 = scmp.eq.s32.totalorder %s25, 0
      %p146 = por %p144, %p145
      %p147 = scmp.ne.s32.totalorder %s135, %s136
      %p148 = scmp.eq.s32.totalorder %s26, 1
      %p149 = por %p147, %p148
      %p151 = scmp.ne.s32.totalorder %s136, %s150
      %p152 = scmp.eq.s32.totalorder %s26, 0
      %p153 = por %p151, %p152
      %s155 = sadd.s32 %s154, 1
      %p158 = scmp.eq.s32.totalorder %s20, 1
      %p159 = scmp.ne.s32.totalorder %s154, %s156
      %p160 = scmp.eq.s32.totalorder %s20, 0
      %p161 = por %p159, %p160
      %p162 = scmp.ne.s32.totalorder %s154, %s156
      %p163 = scmp.eq.s32.totalorder %s25, 1
      %p164 = por %p162, %p163
      %p165 = scmp.ne.s32.totalorder %s156, %s157
      %p166 = scmp.eq.s32.totalorder %s25, 0
      %p167 = por %p165, %p166
      %p168 = scmp.ne.s32.totalorder %s156, %s157
      %p169 = scmp.eq.s32.totalorder %s26, 1
      %p170 = por %p168, %p169
      %p172 = scmp.ne.s32.totalorder %s157, %s171
      %p173 = scmp.eq.s32.totalorder %s26, 0
      %p174 = por %p172, %p173
      %s175 = ssub.s32 %s20, %s27
      %p176 = scmp.eq.s32.totalorder %s175, 0
      %s178 = sadd.s32 %s177, 1
      %s179 = scalar_select %p176, %s177, %s178
      %p182 = pneg %p176
      %p183 = scmp.eq.s32.totalorder %s20, 1
      %p184 = por %p182, %p183
      %p185 = scmp.ne.s32.totalorder %s177, %s180
      %p186 = scmp.eq.s32.totalorder %s20, 0
      %p187 = por %p185, %p186
      %p188 = scmp.ne.s32.totalorder %s177, %s180
      %p189 = scmp.eq.s32.totalorder %s25, 1
      %p190 = por %p188, %p189
      %p191 = scmp.ne.s32.totalorder %s180, %s181
      %p192 = scmp.eq.s32.totalorder %s25, 0
      %p193 = por %p191, %p192
      %p194 = scmp.ne.s32.totalorder %s180, %s181
      %p195 = scmp.eq.s32.totalorder %s26, 1
      %p196 = por %p194, %p195
      %p198 = scmp.ne.s32.totalorder %s181, %s197
      %p199 = scmp.eq.s32.totalorder %s26, 0
      %p200 = por %p198, %p199
      %s201 = ssub.s32 %s20, %s27
      %p202 = scmp.eq.s32.totalorder %s201, 0
      %s204 = sadd.s32 %s203, 1
      %s205 = scalar_select %p202, %s203, %s204
      %p208 = pneg %p202
      %p209 = scmp.eq.s32.totalorder %s20, 1
      %p210 = por %p208, %p209
      %p211 = scmp.ne.s32.totalorder %s203, %s206
      %p212 = scmp.eq.s32.totalorder %s20, 0
      %p213 = por %p211, %p212
      %p214 = scmp.ne.s32.totalorder %s203, %s206
      %p215 = scmp.eq.s32.totalorder %s25, 1
      %p216 = por %p214, %p215
      %p217 = scmp.ne.s32.totalorder %s206, %s207
      %p218 = scmp.eq.s32.totalorder %s25, 0
      %p219 = por %p217, %p218
      %p220 = scmp.ne.s32.totalorder %s206, %s207
      %p221 = scmp.eq.s32.totalorder %s26, 1
      %p222 = por %p220, %p221
      %p224 = scmp.ne.s32.totalorder %s207, %s223
      %p225 = scmp.eq.s32.totalorder %s26, 0
      %p226 = por %p224, %p225
      %s227 = ssub.s32 %s20, %s27
      %p228 = scmp.eq.s32.totalorder %s227, 0
      %s230 = sadd.s32 %s229, 1
      %s231 = scalar_select %p228, %s229, %s230
      %p234 = pneg %p228
      %p235 = scmp.eq.s32.totalorder %s20, 1
      %p236 = por %p234, %p235
      %p237 = scmp.ne.s32.totalorder %s229, %s232
      %p238 = scmp.eq.s32.totalorder %s20, 0
      %p239 = por %p237, %p238
      %p240 = scmp.ne.s32.totalorder %s229, %s232
      %p241 = scmp.eq.s32.totalorder %s25, 1
      %p242 = por %p240, %p241
      %p243 = scmp.ne.s32.totalorder %s232, %s233
      %p244 = scmp.eq.s32.totalorder %s25, 0
      %p245 = por %p243, %p244
      %p246 = scmp.ne.s32.totalorder %s232, %s233
      %p247 = scmp.eq.s32.totalorder %s26, 1
      %p248 = por %p246, %p247
      %p250 = scmp.ne.s32.totalorder %s233, %s249
      %p251 = scmp.eq.s32.totalorder %s26, 0
      %p252 = por %p250, %p251
      %p253 = scmp.le.s32.totalorder 1, %s20
      %p254 = scmp.lt.s32.totalorder %s20, 3
      %p255 = pnand %p253, %p254
      %p256 = pneg %p255
      // Predicated region
      $region9: #{decoder_forward.1} parent=5 // pred_check
        _
      $region10: #{decoder_forward.1} parent=5 // pred_check_branch
        %258 = sbr.rel (%p255) target = $region12
      $region11: #{decoder_forward.1} parent=5 // pred_region
        %s259 = ssub.s32 %s20, 1
        // Predicated region
        $region13: #{decoder_forward.1} parent=11 // pred_check
          %p260 = pneg %p41
        $region14: #{decoder_forward.1} parent=11 // pred_check_branch
          %262 = sbr.rel (%p260) target = $region16
        $region15: #{decoder_forward.1} parent=11 // pred_region
          _
        $region16: #{decoder_forward.1} parent=11 // pred_fallthru
          _
        // Predicated region
        $region17: #{decoder_forward.1} parent=11 // pred_check
          %p263 = pneg %p62
        $region18: #{decoder_forward.1} parent=11 // pred_check_branch
          %265 = sbr.rel (%p263) target = $region20
        $region19: #{decoder_forward.1} parent=11 // pred_region
          %s267 = ssub.s32 4096, 4096
          %268 = vsyncadd [#allocation3], %s267
          %s269 = sshll.u32 [#allocation2], 4
          %s270 = int_to_ptr.vmem [resolvable:$true] %s269
          %275 = dma.hbm_to_vmem [thread:$0]  %s1, 4096, %s270, [#allocation3], 256, 256, 16
        $region20: #{decoder_forward.1} parent=11 // pred_fallthru
          _
        // Predicated region
        $region21: #{decoder_forward.1} parent=11 // pred_check
          %p276 = pneg %p83
        $region22: #{decoder_forward.1} parent=11 // pred_check_branch
          %278 = sbr.rel (%p276) target = $region24
        $region23: #{decoder_forward.1} parent=11 // pred_region
          _
        $region24: #{decoder_forward.1} parent=11 // pred_fallthru
          _
        // Predicated region
        $region25: #{decoder_forward.1} parent=11 // pred_check
          %p279 = pneg %p104
        $region26: #{decoder_forward.1} parent=11 // pred_check_branch
          %281 = sbr.rel (%p279) target = $region28
        $region27: #{decoder_forward.1} parent=11 // pred_region
          %s283 = ssub.s32 16384, 16384
          %284 = vsyncadd [#allocation5], %s283
          %s285 = sshll.u32 [#allocation4], 4
          %s286 = int_to_ptr.vmem [resolvable:$true] %s285
          %291 = dma.hbm_to_vmem [thread:$0]  %s3, 16384, %s286, [#allocation5], 256, 256, 16
        $region28: #{decoder_forward.1} parent=11 // pred_fallthru
          _
        // Predicated region
        $region29: #{decoder_forward.1} parent=11 // pred_check
          %p292 = pneg %p125
        $region30: #{decoder_forward.1} parent=11 // pred_check_branch
          %294 = sbr.rel (%p292) target = $region32
        $region31: #{decoder_forward.1} parent=11 // pred_region
          _
        $region32: #{decoder_forward.1} parent=11 // pred_fallthru
          _
        // Predicated region
        $region33: #{decoder_forward.1} parent=11 // pred_check
          %p295 = pneg %p146
        $region34: #{decoder_forward.1} parent=11 // pred_check_branch
          %297 = sbr.rel (%p295) target = $region36
        $region35: #{decoder_forward.1} parent=11 // pred_region
          %s299 = ssub.s32 16384, 16384
          %300 = vsyncadd [#allocation5], %s299
          %s301 = sshll.u32 [#allocation6], 4
          %s302 = int_to_ptr.vmem [resolvable:$true] %s301
          %307 = dma.hbm_to_vmem [thread:$0]  %s5, 16384, %s302, [#allocation5], 256, 256, 16
        $region36: #{decoder_forward.1} parent=11 // pred_fallthru
          _
        // Predicated region
        $region37: #{decoder_forward.1} parent=11 // pred_check
          %p308 = pneg %p167
        $region38: #{decoder_forward.1} parent=11 // pred_check_branch
          %310 = sbr.rel (%p308) target = $region40
        $region39: #{decoder_forward.1} parent=11 // pred_region
          _
        $region40: #{decoder_forward.1} parent=11 // pred_fallthru
          _
      $region12: #{decoder_forward.1} parent=5 // pred_fallthru
        _
      %p311 = scmp.lt.s32.totalorder %s20, 2
      // Predicated region
      $region41: #{decoder_forward.1} parent=5 // pred_check
        %p312 = pneg %p311
      $region42: #{decoder_forward.1} parent=5 // pred_check_branch
        %314 = sbr.rel (%p312) target = $region44
      $region43: #{decoder_forward.1} parent=5 // pred_region
        // Predicated region
        $region45: #{decoder_forward.1} parent=43 // pred_check
          %p315 = pneg %p187
        $region46: #{decoder_forward.1} parent=43 // pred_check_branch
          %317 = sbr.rel (%p315) target = $region48
        $region47: #{decoder_forward.1} parent=43 // pred_region
          %s318 = sand.u32 %s177, 1
          %s319 = scalar_lea.sflag [#allocation8], %s318
          %s320 = sand.u32 %s177, 1
          %s321 = smul.addr %s320, 768
          %s322 = scalar_lea.vmem [#allocation7], %s321
          %s323 = smul.u32 3, %s20
          %s325 = ssub.s32 12288, 12288
          %326 = vsyncadd %s319, %s325
          %s327 = smul.addr %s323, 64
          %s328 = scalar_lea.hbm %s7, %s327
          %s329 = sshll.u32 %s322, 4
          %s330 = int_to_ptr.vmem [resolvable:$true] %s329
          %335 = dma.hbm_to_vmem [thread:$0]  %s328, 12288, %s330, %s319, 384, 192, 12
        $region48: #{decoder_forward.1} parent=43 // pred_fallthru
          _
        // Predicated region
        $region49: #{decoder_forward.1} parent=43 // pred_check
          %p336 = pneg %p213
        $region50: #{decoder_forward.1} parent=43 // pred_check_branch
          %338 = sbr.rel (%p336) target = $region52
        $region51: #{decoder_forward.1} parent=43 // pred_region
          %s339 = smul.u32 3, %s20
          %p340 = scmp.lt.s32.totalorder %s339, 5
          %s341 = scalar_select %p340, %s339, 5
          %s342 = scalar_lea.vmem %s8, %s341
          %s343 = smul.u32 3, %s20
        $region52: #{decoder_forward.1} parent=43 // pred_fallthru
          _
      $region44: #{decoder_forward.1} parent=5 // pred_fallthru
        _
      %p344 = scmp.le.s32.totalorder 1, %s20
      %p345 = scmp.lt.s32.totalorder %s20, 3
      %p346 = pnand %p344, %p345
      %p347 = pneg %p346
      // Predicated region
      $region53: #{decoder_forward.1} parent=5 // pred_check
        _
      $region54: #{decoder_forward.1} parent=5 // pred_check_branch
        %349 = sbr.rel (%p346) target = $region56
      $region55: #{decoder_forward.1} parent=5 // pred_region
        %s350 = ssub.s32 %s20, 1
        // Predicated region
        $region57: #{decoder_forward.1} parent=55 // pred_check
          %p351 = pneg %p62
        $region58: #{decoder_forward.1} parent=55 // pred_check_branch
          %353 = sbr.rel (%p351) target = $region60
        $region59: #{decoder_forward.1} parent=55 // pred_region
          %354 = dma.done [#allocation3], 4096
        $region60: #{decoder_forward.1} parent=55 // pred_fallthru
          _
        // Predicated region
        $region61: #{decoder_forward.1} parent=55 // pred_check
          %p355 = pneg %p104
        $region62: #{decoder_forward.1} parent=55 // pred_check_branch
          %357 = sbr.rel (%p355) target = $region64
        $region63: #{decoder_forward.1} parent=55 // pred_region
          %358 = dma.done [#allocation5], 16384
        $region64: #{decoder_forward.1} parent=55 // pred_fallthru
          _
        // Predicated region
        $region65: #{decoder_forward.1} parent=55 // pred_check
          %p359 = pneg %p146
        $region66: #{decoder_forward.1} parent=55 // pred_check_branch
          %361 = sbr.rel (%p359) target = $region68
        $region67: #{decoder_forward.1} parent=55 // pred_region
          %362 = dma.done [#allocation5], 16384
        $region68: #{decoder_forward.1} parent=55 // pred_fallthru
          _
        %s363 = sand.u32 %s180, 1
        %s364 = scalar_lea.sflag [#allocation8], %s363
        %s365 = sand.u32 %s180, 1
        %s366 = smul.addr %s365, 768
        %s367 = scalar_lea.vmem [#allocation7], %s366
        // Predicated region
        $region69: #{decoder_forward.1} parent=55 // pred_check
          %p368 = pneg %p193
        $region70: #{decoder_forward.1} parent=55 // pred_check_branch
          %370 = sbr.rel (%p368) target = $region72
        $region71: #{decoder_forward.1} parent=55 // pred_region
          %371 = dma.done %s364, 12288
        $region72: #{decoder_forward.1} parent=55 // pred_fallthru
          _
        %p372 = pneg %p41
        %p373 = pneg %p38
        %p374 = pneg %p62
        %p375 = pneg %p59
        %p376 = pneg %p83
        %p377 = pneg %p80
        %p378 = pneg %p104
        %p379 = pneg %p101
        %p380 = pneg %p125
        %p381 = pneg %p122
        %p382 = pneg %p146
        %p383 = pneg %p143
        %p384 = pneg %p167
        %p385 = pneg %p164
        %s386 = sand.u32 %s180, 1
        %s387 = scalar_lea.sflag [#allocation8], %s386
        %s388 = sand.u32 %s180, 1
        %s389 = smul.addr %s388, 768
        %s390 = scalar_lea.vmem [#allocation7], %s389
        %p391 = pneg %p193
        %p392 = pneg %p190
        %s393 = smul.u32 3, %s25
        %p394 = scmp.lt.s32.totalorder %s393, 5
        %s395 = scalar_select %p394, %s393, 5
        %s396 = scalar_lea.vmem %s8, %s395
        %p397 = pneg %p219
        %p398 = pneg %p216
        %p399 = pneg %p245
        %p400 = pneg %p242
        %s401 = sand.u32 %s232, 1
        %s402 = sand.u32 %s232, 1
        %s403 = smul.addr %s402, 48
        %s404 = scalar_lea.vmem [#allocation9], %s403
        %s405 = smul.u32 3, %s25
        %s406 = smul.u32 3, %s25
        %p407 = scmp.lt.s32.totalorder %s406, 5
        %s408 = scalar_select %p407, %s406, 5
        %s409 = scalar_lea.vmem %s8, %s408
        %s410 = smul.u32 3, %s25
        %s411 = smul.u32 3, %s25
        %v413 = vld [vmem:[%s0] sm:$0xf]
        %v414 = vld [vmem:[%s0 + $0x4] sm:$0xf]
        %v415 = vld [vmem:[#allocation2] sm:$0xff]
        %v416 = vld [vmem:[#allocation2 + $0x8] sm:$0xff]
        %v417 = vld [vmem:[#allocation2 + $0x10] sm:$0xff]
        %v418 = vld [vmem:[#allocation2 + $0x18] sm:$0xff]
        %v419 = vld [vmem:[#allocation2 + $0x20] sm:$0xff]
        %v420 = vld [vmem:[#allocation2 + $0x28] sm:$0xff]
        %v421 = vld [vmem:[#allocation2 + $0x30] sm:$0xff]
        %v422 = vld [vmem:[#allocation2 + $0x38] sm:$0xff]
        %v423 = vld [vmem:[#allocation2 + $0x40] sm:$0xff]
        %v424 = vld [vmem:[#allocation2 + $0x48] sm:$0xff]
        %v425 = vld [vmem:[#allocation2 + $0x50] sm:$0xff]
        %v426 = vld [vmem:[#allocation2 + $0x58] sm:$0xff]
        %v427 = vld [vmem:[#allocation2 + $0x60] sm:$0xff]
        %v428 = vld [vmem:[#allocation2 + $0x68] sm:$0xff]
        %v429 = vld [vmem:[#allocation2 + $0x70] sm:$0xff]
        %v430 = vld [vmem:[#allocation2 + $0x78] sm:$0xff]
        %v431 = vld [vmem:[#allocation2 + $0x80] sm:$0xff]
        %v432 = vld [vmem:[#allocation2 + $0x88] sm:$0xff]
        %v433 = vld [vmem:[#allocation2 + $0x90] sm:$0xff]
        %v434 = vld [vmem:[#allocation2 + $0x98] sm:$0xff]
        %v435 = vld [vmem:[#allocation2 + $0xa0] sm:$0xff]
        %v436 = vld [vmem:[#allocation2 + $0xa8] sm:$0xff]
        %v437 = vld [vmem:[#allocation2 + $0xb0] sm:$0xff]
        %v438 = vld [vmem:[#allocation2 + $0xb8] sm:$0xff]
        %v439 = vld [vmem:[#allocation2 + $0xc0] sm:$0xff]
        %v440 = vld [vmem:[#allocation2 + $0xc8] sm:$0xff]
        %v441 = vld [vmem:[#allocation2 + $0xd0] sm:$0xff]
        %v442 = vld [vmem:[#allocation2 + $0xd8] sm:$0xff]
        %v443 = vld [vmem:[#allocation2 + $0xe0] sm:$0xff]
        %v444 = vld [vmem:[#allocation2 + $0xe8] sm:$0xff]
        %v445 = vld [vmem:[#allocation2 + $0xf0] sm:$0xff]
        %v446 = vld [vmem:[#allocation2 + $0xf8] sm:$0xff]
        %v447 = vld [vmem:[%s2] sm:$0xf]
        %v449 = vlaneseq
        %v450 = vshrl.u32 %v449, 7
        %v451 = vsub.s32 0, %v450
        %v452 = vrot.slane %v447, %v451
        %v453 = vlaneseq
        %v454 = vshrl.u32 %v453, 7
        %v455 = vsub.s32 1, %v454
        %v456 = vrot.slane %v447, %v455
        %v457 = vlaneseq
        %v458 = vshrl.u32 %v457, 7
        %v459 = vsub.s32 2, %v458
        %v460 = vrot.slane %v447, %v459
        %v461 = vlaneseq
        %v462 = vshrl.u32 %v461, 7
        %v463 = vsub.s32 3, %v462
        %v464 = vrot.slane %v447, %v463
        %v471 = vunpack.c.l.b16 %v413
        %v472 = vunpack.c.l.b16 %v414
        %v473 = vpack.c.b16 %v472, %v471
        %v507 = vunpack.c.l.b16 %v415
        %v508 = vunpack.c.h.b16 %v415
        %v509 = vunpack.c.l.b16 %v416
        %v510 = vunpack.c.h.b16 %v416
        %v511 = vunpack.c.l.b16 %v417
        %v512 = vunpack.c.h.b16 %v417
        %v513 = vunpack.c.l.b16 %v418
        %v514 = vunpack.c.h.b16 %v418
        %v515 = vunpack.c.l.b16 %v419
        %v516 = vunpack.c.h.b16 %v419
        %v517 = vunpack.c.l.b16 %v420
        %v518 = vunpack.c.h.b16 %v420
        %v519 = vunpack.c.l.b16 %v421
        %v520 = vunpack.c.h.b16 %v421
        %v521 = vunpack.c.l.b16 %v422
        %v522 = vunpack.c.h.b16 %v422
        %v523 = vunpack.c.l.b16 %v423
        %v524 = vunpack.c.h.b16 %v423
        %v525 = vunpack.c.l.b16 %v424
        %v526 = vunpack.c.h.b16 %v424
        %v527 = vunpack.c.l.b16 %v425
        %v528 = vunpack.c.h.b16 %v425
        %v529 = vunpack.c.l.b16 %v426
        %v530 = vunpack.c.h.b16 %v426
        %v531 = vunpack.c.l.b16 %v427
        %v532 = vunpack.c.h.b16 %v427
        %v533 = vunpack.c.l.b16 %v428
        %v534 = vunpack.c.h.b16 %v428
        %v535 = vunpack.c.l.b16 %v429
        %v536 = vunpack.c.h.b16 %v429
        %v537 = vunpack.c.l.b16 %v430
        %v538 = vunpack.c.h.b16 %v430
        %v539 = vunpack.c.l.b16 %v431
        %v540 = vunpack.c.h.b16 %v431
        %v541 = vunpack.c.l.b16 %v432
        %v542 = vunpack.c.h.b16 %v432
        %v543 = vunpack.c.l.b16 %v433
        %v544 = vunpack.c.h.b16 %v433
        %v545 = vunpack.c.l.b16 %v434
        %v546 = vunpack.c.h.b16 %v434
        %v547 = vunpack.c.l.b16 %v435
        %v548 = vunpack.c.h.b16 %v435
        %v549 = vunpack.c.l.b16 %v436
        %v550 = vunpack.c.h.b16 %v436
        %v551 = vunpack.c.l.b16 %v437
        %v552 = vunpack.c.h.b16 %v437
        %v553 = vunpack.c.l.b16 %v438
        %v554 = vunpack.c.h.b16 %v438
        %v555 = vunpack.c.l.b16 %v439
        %v556 = vunpack.c.h.b16 %v439
        %v557 = vunpack.c.l.b16 %v440
        %v558 = vunpack.c.h.b16 %v440
        %v559 = vunpack.c.l.b16 %v441
        %v560 = vunpack.c.h.b16 %v441
        %v561 = vunpack.c.l.b16 %v442
        %v562 = vunpack.c.h.b16 %v442
        %v563 = vunpack.c.l.b16 %v443
        %v564 = vunpack.c.h.b16 %v443
        %v565 = vunpack.c.l.b16 %v444
        %v566 = vunpack.c.h.b16 %v444
        %v567 = vunpack.c.l.b16 %v445
        %v568 = vunpack.c.h.b16 %v445
        %v569 = vunpack.c.l.b16 %v446
        %v570 = vunpack.c.h.b16 %v446
        %v571 = vpack.c.b16 %v511, %v507
        %v572 = vpack.c.b16 %v512, %v508
        %v573 = vpack.c.b16 %v513, %v509
        %v574 = vpack.c.b16 %v514, %v510
        %v575 = vpack.c.b16 %v519, %v515
        %v576 = vpack.c.b16 %v520, %v516
        %v577 = vpack.c.b16 %v521, %v517
        %v578 = vpack.c.b16 %v522, %v518
        %v579 = vpack.c.b16 %v527, %v523
        %v580 = vpack.c.b16 %v528, %v524
        %v581 = vpack.c.b16 %v529, %v525
        %v582 = vpack.c.b16 %v530, %v526
        %v583 = vpack.c.b16 %v535, %v531
        %v584 = vpack.c.b16 %v536, %v532
        %v585 = vpack.c.b16 %v537, %v533
        %v586 = vpack.c.b16 %v538, %v534
        %v587 = vpack.c.b16 %v543, %v539
        %v588 = vpack.c.b16 %v544, %v540
        %v589 = vpack.c.b16 %v545, %v541
        %v590 = vpack.c.b16 %v546, %v542
        %v591 = vpack.c.b16 %v551, %v547
        %v592 = vpack.c.b16 %v552, %v548
        %v593 = vpack.c.b16 %v553, %v549
        %v594 = vpack.c.b16 %v554, %v550
        %v595 = vpack.c.b16 %v559, %v555
        %v596 = vpack.c.b16 %v560, %v556
        %v597 = vpack.c.b16 %v561, %v557
        %v598 = vpack.c.b16 %v562, %v558
        %v599 = vpack.c.b16 %v567, %v563
        %v600 = vpack.c.b16 %v568, %v564
        %v601 = vpack.c.b16 %v569, %v565
        %v602 = vpack.c.b16 %v570, %v566
        %635 = vmatprep.subr.bf16.mxu0 %v600
        %636 = vmatpush1.bf16.msra.mxu0 %v599
        %637 = vmatprep.subr.bf16.mxu0 %v596
        %638 = vmatpush1.bf16.msra.mxu0 %v595
        %639 = vmatprep.subr.bf16.mxu0 %v592
        %640 = vmatpush1.bf16.msra.mxu0 %v591
        %641 = vmatprep.subr.bf16.mxu0 %v588
        %642 = vmatpush1.bf16.msra.mxu0 %v587
        %643 = vmatprep.subr.bf16.mxu0 %v584
        %644 = vmatpush1.bf16.msra.mxu0 %v583
        %645 = vmatprep.subr.bf16.mxu0 %v580
        %646 = vmatpush1.bf16.msra.mxu0 %v579
        %647 = vmatprep.subr.bf16.mxu0 %v576
        %648 = vmatpush1.bf16.msra.mxu0 %v575
        %649 = vmatprep.subr.bf16.mxu0 %v572
        %650 = vmatpush1.bf16.msra.mxu0 %v571
        %651 = vmatprep.subr.bf16.mxu0 0
        %652 = vmatpush2.bf16.msra.mxu0 0
        %653 = vmatprep.subr.bf16.mxu0 0
        %654 = vmatpush2.bf16.msra.mxu0 0
        %655 = vmatprep.subr.bf16.mxu0 0
        %656 = vmatpush2.bf16.msra.mxu0 0
        %657 = vmatprep.subr.bf16.mxu0 0
        %658 = vmatpush2.bf16.msra.mxu0 0
        %659 = vmatprep.subr.bf16.mxu0 0
        %660 = vmatpush2.bf16.msra.mxu0 0
        %661 = vmatprep.subr.bf16.mxu0 0
        %662 = vmatpush2.bf16.msra.mxu0 0
        %663 = vmatprep.subr.bf16.mxu0 0
        %664 = vmatpush2.bf16.msra.mxu0 0
        %665 = vmatprep.subr.bf16.mxu0 0
        %666 = vmatpush2.bf16.msra.mxu0 0
        %667 = vmatprep.mubr.bf16.mxu0 0
        %668 = vmatmul.mubr.bf16.gmra.mxu0 %v473
        %v669 = vpop.f32.mrf.mxu0
        %v670 = vadd.f32 %v452, %v669
        %v671 = vpop.f32.mrf.mxu0
        %v672 = vadd.f32 %v456, %v671
        %v673 = vpop.f32.mrf.mxu0
        %v674 = vadd.f32 %v452, %v673
        %v675 = vpop.f32.mrf.mxu0
        %v676 = vadd.f32 %v456, %v675
        %677 = vdwg.mxu0
        %678 = vmatprep.subr.bf16.mxu0 %v602
        %679 = vmatpush1.bf16.msra.mxu0 %v601
        %680 = vmatprep.subr.bf16.mxu0 %v598
        %681 = vmatpush1.bf16.msra.mxu0 %v597
        %682 = vmatprep.subr.bf16.mxu0 %v594
        %683 = vmatpush1.bf16.msra.mxu0 %v593
        %684 = vmatprep.subr.bf16.mxu0 %v590
        %685 = vmatpush1.bf16.msra.mxu0 %v589
        %686 = vmatprep.subr.bf16.mxu0 %v586
        %687 = vmatpush1.bf16.msra.mxu0 %v585
        %688 = vmatprep.subr.bf16.mxu0 %v582
        %689 = vmatpush1.bf16.msra.mxu0 %v581
        %690 = vmatprep.subr.bf16.mxu0 %v578
        %691 = vmatpush1.bf16.msra.mxu0 %v577
        %692 = vmatprep.subr.bf16.mxu0 %v574
        %693 = vmatpush1.bf16.msra.mxu0 %v573
        %694 = vmatprep.subr.bf16.mxu0 0
        %695 = vmatpush2.bf16.msra.mxu0 0
        %696 = vmatprep.subr.bf16.mxu0 0
        %697 = vmatpush2.bf16.msra.mxu0 0
        %698 = vmatprep.subr.bf16.mxu0 0
        %699 = vmatpush2.bf16.msra.mxu0 0
        %700 = vmatprep.subr.bf16.mxu0 0
        %701 = vmatpush2.bf16.msra.mxu0 0
        %702 = vmatprep.subr.bf16.mxu0 0
        %703 = vmatpush2.bf16.msra.mxu0 0
        %704 = vmatprep.subr.bf16.mxu0 0
        %705 = vmatpush2.bf16.msra.mxu0 0
        %706 = vmatprep.subr.bf16.mxu0 0
        %707 = vmatpush2.bf16.msra.mxu0 0
        %708 = vmatprep.subr.bf16.mxu0 0
        %709 = vmatpush2.bf16.msra.mxu0 0
        %710 = vmatprep.mubr.bf16.mxu0 0
        %711 = vmatmul.mubr.bf16.gmra.mxu0 %v473
        %v712 = vpop.f32.mrf.mxu0
        %v713 = vadd.f32 %v460, %v712
        %v714 = vpop.f32.mrf.mxu0
        %v715 = vadd.f32 %v464, %v714
        %v716 = vpop.f32.mrf.mxu0
        %v717 = vadd.f32 %v460, %v716
        %v718 = vpop.f32.mrf.mxu0
        %v719 = vadd.f32 %v464, %v718
        %720 = vdwg.mxu0
        %v721 = vmax.f32 %v670, 0.0
        %v722 = vmax.f32 %v672, 0.0
        %v723 = vmax.f32 %v713, 0.0
        %v724 = vmax.f32 %v715, 0.0
        %v725 = vmax.f32 %v674, 0.0
        %v726 = vmax.f32 %v676, 0.0
        %v727 = vmax.f32 %v717, 0.0
        %v728 = vmax.f32 %v719, 0.0
        %v729 = vpack.c.bf16 %v725, %v721
        %v730 = vpack.c.bf16 %v726, %v722
        %v731 = vpack.c.bf16 %v727, %v723
        %v732 = vpack.c.bf16 %v728, %v724
        %v733 = vld [vmem:[#allocation4] sm:$0xff]
        %v734 = vld [vmem:[#allocation4 + $0x8] sm:$0xff]
        %v735 = vld [vmem:[#allocation4 + $0x10] sm:$0xff]
        %v736 = vld [vmem:[#allocation4 + $0x18] sm:$0xff]
        %v737 = vld [vmem:[#allocation4 + $0x20] sm:$0xff]
        %v738 = vld [vmem:[#allocation4 + $0x28] sm:$0xff]
        %v739 = vld [vmem:[#allocation4 + $0x30] sm:$0xff]
        %v740 = vld [vmem:[#allocation4 + $0x38] sm:$0xff]
        %v741 = vld [vmem:[#allocation4 + $0x40] sm:$0xff]
        %v742 = vld [vmem:[#allocation4 + $0x48] sm:$0xff]
        %v743 = vld [vmem:[#allocation4 + $0x50] sm:$0xff]
        %v744 = vld [vmem:[#allocation4 + $0x58] sm:$0xff]
        %v745 = vld [vmem:[#allocation4 + $0x60] sm:$0xff]
        %v746 = vld [vmem:[#allocation4 + $0x68] sm:$0xff]
        %v747 = vld [vmem:[#allocation4 + $0x70] sm:$0xff]
        %v748 = vld [vmem:[#allocation4 + $0x78] sm:$0xff]
        %v749 = vld [vmem:[#allocation4 + $0x80] sm:$0xff]
        %v750 = vld [vmem:[#allocation4 + $0x88] sm:$0xff]
        %v751 = vld [vmem:[#allocation4 + $0x90] sm:$0xff]
        %v752 = vld [vmem:[#allocation4 + $0x98] sm:$0xff]
        %v753 = vld [vmem:[#allocation4 + $0xa0] sm:$0xff]
        %v754 = vld [vmem:[#allocation4 + $0xa8] sm:$0xff]
        %v755 = vld [vmem:[#allocation4 + $0xb0] sm:$0xff]
        %v756 = vld [vmem:[#allocation4 + $0xb8] sm:$0xff]
        %v757 = vld [vmem:[#allocation4 + $0xc0] sm:$0xff]
        %v758 = vld [vmem:[#allocation4 + $0xc8] sm:$0xff]
        %v759 = vld [vmem:[#allocation4 + $0xd0] sm:$0xff]
        %v760 = vld [vmem:[#allocation4 + $0xd8] sm:$0xff]
        %v761 = vld [vmem:[#allocation4 + $0xe0] sm:$0xff]
        %v762 = vld [vmem:[#allocation4 + $0xe8] sm:$0xff]
        %v763 = vld [vmem:[#allocation4 + $0xf0] sm:$0xff]
        %v764 = vld [vmem:[#allocation4 + $0xf8] sm:$0xff]
        %v765 = vld [vmem:[#allocation4 + $0x100] sm:$0xff]
        %v766 = vld [vmem:[#allocation4 + $0x108] sm:$0xff]
        %v767 = vld [vmem:[#allocation4 + $0x110] sm:$0xff]
        %v768 = vld [vmem:[#allocation4 + $0x118] sm:$0xff]
        %v769 = vld [vmem:[#allocation4 + $0x120] sm:$0xff]
        %v770 = vld [vmem:[#allocation4 + $0x128] sm:$0xff]
        %v771 = vld [vmem:[#allocation4 + $0x130] sm:$0xff]
        %v772 = vld [vmem:[#allocation4 + $0x138] sm:$0xff]
        %v773 = vld [vmem:[#allocation4 + $0x140] sm:$0xff]
        %v774 = vld [vmem:[#allocation4 + $0x148] sm:$0xff]
        %v775 = vld [vmem:[#allocation4 + $0x150] sm:$0xff]
        %v776 = vld [vmem:[#allocation4 + $0x158] sm:$0xff]
        %v777 = vld [vmem:[#allocation4 + $0x160] sm:$0xff]
        %v778 = vld [vmem:[#allocation4 + $0x168] sm:$0xff]
        %v779 = vld [vmem:[#allocation4 + $0x170] sm:$0xff]
        %v780 = vld [vmem:[#allocation4 + $0x178] sm:$0xff]
        %v781 = vld [vmem:[#allocation4 + $0x180] sm:$0xff]
        %v782 = vld [vmem:[#allocation4 + $0x188] sm:$0xff]
        %v783 = vld [vmem:[#allocation4 + $0x190] sm:$0xff]
        %v784 = vld [vmem:[#allocation4 + $0x198] sm:$0xff]
        %v785 = vld [vmem:[#allocation4 + $0x1a0] sm:$0xff]
        %v786 = vld [vmem:[#allocation4 + $0x1a8] sm:$0xff]
        %v787 = vld [vmem:[#allocation4 + $0x1b0] sm:$0xff]
        %v788 = vld [vmem:[#allocation4 + $0x1b8] sm:$0xff]
        %v789 = vld [vmem:[#allocation4 + $0x1c0] sm:$0xff]
        %v790 = vld [vmem:[#allocation4 + $0x1c8] sm:$0xff]
        %v791 = vld [vmem:[#allocation4 + $0x1d0] sm:$0xff]
        %v792 = vld [vmem:[#allocation4 + $0x1d8] sm:$0xff]
        %v793 = vld [vmem:[#allocation4 + $0x1e0] sm:$0xff]
        %v794 = vld [vmem:[#allocation4 + $0x1e8] sm:$0xff]
        %v795 = vld [vmem:[#allocation4 + $0x1f0] sm:$0xff]
        %v796 = vld [vmem:[#allocation4 + $0x1f8] sm:$0xff]
        %v797 = vld [vmem:[#allocation4 + $0x200] sm:$0xff]
        %v798 = vld [vmem:[#allocation4 + $0x208] sm:$0xff]
        %v799 = vld [vmem:[#allocation4 + $0x210] sm:$0xff]
        %v800 = vld [vmem:[#allocation4 + $0x218] sm:$0xff]
        %v801 = vld [vmem:[#allocation4 + $0x220] sm:$0xff]
        %v802 = vld [vmem:[#allocation4 + $0x228] sm:$0xff]
        %v803 = vld [vmem:[#allocation4 + $0x230] sm:$0xff]
        %v804 = vld [vmem:[#allocation4 + $0x238] sm:$0xff]
        %v805 = vld [vmem:[#allocation4 + $0x240] sm:$0xff]
        %v806 = vld [vmem:[#allocation4 + $0x248] sm:$0xff]
        %v807 = vld [vmem:[#allocation4 + $0x250] sm:$0xff]
        %v808 = vld [vmem:[#allocation4 + $0x258] sm:$0xff]
        %v809 = vld [vmem:[#allocation4 + $0x260] sm:$0xff]
        %v810 = vld [vmem:[#allocation4 + $0x268] sm:$0xff]
        %v811 = vld [vmem:[#allocation4 + $0x270] sm:$0xff]
        %v812 = vld [vmem:[#allocation4 + $0x278] sm:$0xff]
        %v813 = vld [vmem:[#allocation4 + $0x280] sm:$0xff]
        %v814 = vld [vmem:[#allocation4 + $0x288] sm:$0xff]
        %v815 = vld [vmem:[#allocation4 + $0x290] sm:$0xff]
        %v816 = vld [vmem:[#allocation4 + $0x298] sm:$0xff]
        %v817 = vld [vmem:[#allocation4 + $0x2a0] sm:$0xff]
        %v818 = vld [vmem:[#allocation4 + $0x2a8] sm:$0xff]
        %v819 = vld [vmem:[#allocation4 + $0x2b0] sm:$0xff]
        %v820 = vld [vmem:[#allocation4 + $0x2b8] sm:$0xff]
        %v821 = vld [vmem:[#allocation4 + $0x2c0] sm:$0xff]
        %v822 = vld [vmem:[#allocation4 + $0x2c8] sm:$0xff]
        %v823 = vld [vmem:[#allocation4 + $0x2d0] sm:$0xff]
        %v824 = vld [vmem:[#allocation4 + $0x2d8] sm:$0xff]
        %v825 = vld [vmem:[#allocation4 + $0x2e0] sm:$0xff]
        %v826 = vld [vmem:[#allocation4 + $0x2e8] sm:$0xff]
        %v827 = vld [vmem:[#allocation4 + $0x2f0] sm:$0xff]
        %v828 = vld [vmem:[#allocation4 + $0x2f8] sm:$0xff]
        %v829 = vld [vmem:[#allocation4 + $0x300] sm:$0xff]
        %v830 = vld [vmem:[#allocation4 + $0x308] sm:$0xff]
        %v831 = vld [vmem:[#allocation4 + $0x310] sm:$0xff]
        %v832 = vld [vmem:[#allocation4 + $0x318] sm:$0xff]
        %v833 = vld [vmem:[#allocation4 + $0x320] sm:$0xff]
        %v834 = vld [vmem:[#allocation4 + $0x328] sm:$0xff]
        %v835 = vld [vmem:[#allocation4 + $0x330] sm:$0xff]
        %v836 = vld [vmem:[#allocation4 + $0x338] sm:$0xff]
        %v837 = vld [vmem:[#allocation4 + $0x340] sm:$0xff]
        %v838 = vld [vmem:[#allocation4 + $0x348] sm:$0xff]
        %v839 = vld [vmem:[#allocation4 + $0x350] sm:$0xff]
        %v840 = vld [vmem:[#allocation4 + $0x358] sm:$0xff]
        %v841 = vld [vmem:[#allocation4 + $0x360] sm:$0xff]
        %v842 = vld [vmem:[#allocation4 + $0x368] sm:$0xff]
        %v843 = vld [vmem:[#allocation4 + $0x370] sm:$0xff]
        %v844 = vld [vmem:[#allocation4 + $0x378] sm:$0xff]
        %v845 = vld [vmem:[#allocation4 + $0x380] sm:$0xff]
        %v846 = vld [vmem:[#allocation4 + $0x388] sm:$0xff]
        %v847 = vld [vmem:[#allocation4 + $0x390] sm:$0xff]
        %v848 = vld [vmem:[#allocation4 + $0x398] sm:$0xff]
        %v849 = vld [vmem:[#allocation4 + $0x3a0] sm:$0xff]
        %v850 = vld [vmem:[#allocation4 + $0x3a8] sm:$0xff]
        %v851 = vld [vmem:[#allocation4 + $0x3b0] sm:$0xff]
        %v852 = vld [vmem:[#allocation4 + $0x3b8] sm:$0xff]
        %v853 = vld [vmem:[#allocation4 + $0x3c0] sm:$0xff]
        %v854 = vld [vmem:[#allocation4 + $0x3c8] sm:$0xff]
        %v855 = vld [vmem:[#allocation4 + $0x3d0] sm:$0xff]
        %v856 = vld [vmem:[#allocation4 + $0x3d8] sm:$0xff]
        %v857 = vld [vmem:[#allocation4 + $0x3e0] sm:$0xff]
        %v858 = vld [vmem:[#allocation4 + $0x3e8] sm:$0xff]
        %v859 = vld [vmem:[#allocation4 + $0x3f0] sm:$0xff]
        %v860 = vld [vmem:[#allocation4 + $0x3f8] sm:$0xff]
        %v861 = vld [vmem:[%s4] sm:$0xf]
        %v863 = vlaneseq
        %v864 = vshrl.u32 %v863, 7
        %v865 = vsub.s32 0, %v864
        %v866 = vrot.slane %v861, %v865
        %v867 = vlaneseq
        %v868 = vshrl.u32 %v867, 7
        %v869 = vsub.s32 1, %v868
        %v870 = vrot.slane %v861, %v869
        %v871 = vlaneseq
        %v872 = vshrl.u32 %v871, 7
        %v873 = vsub.s32 2, %v872
        %v874 = vrot.slane %v861, %v873
        %v875 = vlaneseq
        %v876 = vshrl.u32 %v875, 7
        %v877 = vsub.s32 3, %v876
        %v878 = vrot.slane %v861, %v877
        %v1011 = vunpack.c.l.b16 %v733
        %v1012 = vunpack.c.h.b16 %v733
        %v1013 = vunpack.c.l.b16 %v734
        %v1014 = vunpack.c.h.b16 %v734
        %v1015 = vunpack.c.l.b16 %v735
        %v1016 = vunpack.c.h.b16 %v735
        %v1017 = vunpack.c.l.b16 %v736
        %v1018 = vunpack.c.h.b16 %v736
        %v1019 = vunpack.c.l.b16 %v737
        %v1020 = vunpack.c.h.b16 %v737
        %v1021 = vunpack.c.l.b16 %v738
        %v1022 = vunpack.c.h.b16 %v738
        %v1023 = vunpack.c.l.b16 %v739
        %v1024 = vunpack.c.h.b16 %v739
        %v1025 = vunpack.c.l.b16 %v740
        %v1026 = vunpack.c.h.b16 %v740
        %v1027 = vunpack.c.l.b16 %v741
        %v1028 = vunpack.c.h.b16 %v741
        %v1029 = vunpack.c.l.b16 %v742
        %v1030 = vunpack.c.h.b16 %v742
        %v1031 = vunpack.c.l.b16 %v743
        %v1032 = vunpack.c.h.b16 %v743
        %v1033 = vunpack.c.l.b16 %v744
        %v1034 = vunpack.c.h.b16 %v744
        %v1035 = vunpack.c.l.b16 %v745
        %v1036 = vunpack.c.h.b16 %v745
        %v1037 = vunpack.c.l.b16 %v746
        %v1038 = vunpack.c.h.b16 %v746
        %v1039 = vunpack.c.l.b16 %v747
        %v1040 = vunpack.c.h.b16 %v747
        %v1041 = vunpack.c.l.b16 %v748
        %v1042 = vunpack.c.h.b16 %v748
        %v1043 = vunpack.c.l.b16 %v749
        %v1044 = vunpack.c.h.b16 %v749
        %v1045 = vunpack.c.l.b16 %v750
        %v1046 = vunpack.c.h.b16 %v750
        %v1047 = vunpack.c.l.b16 %v751
        %v1048 = vunpack.c.h.b16 %v751
        %v1049 = vunpack.c.l.b16 %v752
        %v1050 = vunpack.c.h.b16 %v752
        %v1051 = vunpack.c.l.b16 %v753
        %v1052 = vunpack.c.h.b16 %v753
        %v1053 = vunpack.c.l.b16 %v754
        %v1054 = vunpack.c.h.b16 %v754
        %v1055 = vunpack.c.l.b16 %v755
        %v1056 = vunpack.c.h.b16 %v755
        %v1057 = vunpack.c.l.b16 %v756
        %v1058 = vunpack.c.h.b16 %v756
        %v1059 = vunpack.c.l.b16 %v757
        %v1060 = vunpack.c.h.b16 %v757
        %v1061 = vunpack.c.l.b16 %v758
        %v1062 = vunpack.c.h.b16 %v758
        %v1063 = vunpack.c.l.b16 %v759
        %v1064 = vunpack.c.h.b16 %v759
        %v1065 = vunpack.c.l.b16 %v760
        %v1066 = vunpack.c.h.b16 %v760
        %v1067 = vunpack.c.l.b16 %v761
        %v1068 = vunpack.c.h.b16 %v761
        %v1069 = vunpack.c.l.b16 %v762
        %v1070 = vunpack.c.h.b16 %v762
        %v1071 = vunpack.c.l.b16 %v763
        %v1072 = vunpack.c.h.b16 %v763
        %v1073 = vunpack.c.l.b16 %v764
        %v1074 = vunpack.c.h.b16 %v764
        %v1075 = vunpack.c.l.b16 %v765
        %v1076 = vunpack.c.h.b16 %v765
        %v1077 = vunpack.c.l.b16 %v766
        %v1078 = vunpack.c.h.b16 %v766
        %v1079 = vunpack.c.l.b16 %v767
        %v1080 = vunpack.c.h.b16 %v767
        %v1081 = vunpack.c.l.b16 %v768
        %v1082 = vunpack.c.h.b16 %v768
        %v1083 = vunpack.c.l.b16 %v769
        %v1084 = vunpack.c.h.b16 %v769
        %v1085 = vunpack.c.l.b16 %v770
        %v1086 = vunpack.c.h.b16 %v770
        %v1087 = vunpack.c.l.b16 %v771
        %v1088 = vunpack.c.h.b16 %v771
        %v1089 = vunpack.c.l.b16 %v772
        %v1090 = vunpack.c.h.b16 %v772
        %v1091 = vunpack.c.l.b16 %v773
        %v1092 = vunpack.c.h.b16 %v773
        %v1093 = vunpack.c.l.b16 %v774
        %v1094 = vunpack.c.h.b16 %v774
        %v1095 = vunpack.c.l.b16 %v775
        %v1096 = vunpack.c.h.b16 %v775
        %v1097 = vunpack.c.l.b16 %v776
        %v1098 = vunpack.c.h.b16 %v776
        %v1099 = vunpack.c.l.b16 %v777
        %v1100 = vunpack.c.h.b16 %v777
        %v1101 = vunpack.c.l.b16 %v778
        %v1102 = vunpack.c.h.b16 %v778
        %v1103 = vunpack.c.l.b16 %v779
        %v1104 = vunpack.c.h.b16 %v779
        %v1105 = vunpack.c.l.b16 %v780
        %v1106 = vunpack.c.h.b16 %v780
        %v1107 = vunpack.c.l.b16 %v781
        %v1108 = vunpack.c.h.b16 %v781
        %v1109 = vunpack.c.l.b16 %v782
        %v1110 = vunpack.c.h.b16 %v782
        %v1111 = vunpack.c.l.b16 %v783
        %v1112 = vunpack.c.h.b16 %v783
        %v1113 = vunpack.c.l.b16 %v784
        %v1114 = vunpack.c.h.b16 %v784
        %v1115 = vunpack.c.l.b16 %v785
        %v1116 = vunpack.c.h.b16 %v785
        %v1117 = vunpack.c.l.b16 %v786
        %v1118 = vunpack.c.h.b16 %v786
        %v1119 = vunpack.c.l.b16 %v787
        %v1120 = vunpack.c.h.b16 %v787
        %v1121 = vunpack.c.l.b16 %v788
        %v1122 = vunpack.c.h.b16 %v788
        %v1123 = vunpack.c.l.b16 %v789
        %v1124 = vunpack.c.h.b16 %v789
        %v1125 = vunpack.c.l.b16 %v790
        %v1126 = vunpack.c.h.b16 %v790
        %v1127 = vunpack.c.l.b16 %v791
        %v1128 = vunpack.c.h.b16 %v791
        %v1129 = vunpack.c.l.b16 %v792
        %v1130 = vunpack.c.h.b16 %v792
        %v1131 = vunpack.c.l.b16 %v793
        %v1132 = vunpack.c.h.b16 %v793
        %v1133 = vunpack.c.l.b16 %v794
        %v1134 = vunpack.c.h.b16 %v794
        %v1135 = vunpack.c.l.b16 %v795
        %v1136 = vunpack.c.h.b16 %v795
        %v1137 = vunpack.c.l.b16 %v796
        %v1138 = vunpack.c.h.b16 %v796
        %v1139 = vunpack.c.l.b16 %v797
        %v1140 = vunpack.c.h.b16 %v797
        %v1141 = vunpack.c.l.b16 %v798
        %v1142 = vunpack.c.h.b16 %v798
        %v1143 = vunpack.c.l.b16 %v799
        %v1144 = vunpack.c.h.b16 %v799
        %v1145 = vunpack.c.l.b16 %v800
        %v1146 = vunpack.c.h.b16 %v800
        %v1147 = vunpack.c.l.b16 %v801
        %v1148 = vunpack.c.h.b16 %v801
        %v1149 = vunpack.c.l.b16 %v802
        %v1150 = vunpack.c.h.b16 %v802
        %v1151 = vunpack.c.l.b16 %v803
        %v1152 = vunpack.c.h.b16 %v803
        %v1153 = vunpack.c.l.b16 %v804
        %v1154 = vunpack.c.h.b16 %v804
        %v1155 = vunpack.c.l.b16 %v805
        %v1156 = vunpack.c.h.b16 %v805
        %v1157 = vunpack.c.l.b16 %v806
        %v1158 = vunpack.c.h.b16 %v806
        %v1159 = vunpack.c.l.b16 %v807
        %v1160 = vunpack.c.h.b16 %v807
        %v1161 = vunpack.c.l.b16 %v808
        %v1162 = vunpack.c.h.b16 %v808
        %v1163 = vunpack.c.l.b16 %v809
        %v1164 = vunpack.c.h.b16 %v809
        %v1165 = vunpack.c.l.b16 %v810
        %v1166 = vunpack.c.h.b16 %v810
        %v1167 = vunpack.c.l.b16 %v811
        %v1168 = vunpack.c.h.b16 %v811
        %v1169 = vunpack.c.l.b16 %v812
        %v1170 = vunpack.c.h.b16 %v812
        %v1171 = vunpack.c.l.b16 %v813
        %v1172 = vunpack.c.h.b16 %v813
        %v1173 = vunpack.c.l.b16 %v814
        %v1174 = vunpack.c.h.b16 %v814
        %v1175 = vunpack.c.l.b16 %v815
        %v1176 = vunpack.c.h.b16 %v815
        %v1177 = vunpack.c.l.b16 %v816
        %v1178 = vunpack.c.h.b16 %v816
        %v1179 = vunpack.c.l.b16 %v817
        %v1180 = vunpack.c.h.b16 %v817
        %v1181 = vunpack.c.l.b16 %v818
        %v1182 = vunpack.c.h.b16 %v818
        %v1183 = vunpack.c.l.b16 %v819
        %v1184 = vunpack.c.h.b16 %v819
        %v1185 = vunpack.c.l.b16 %v820
        %v1186 = vunpack.c.h.b16 %v820
        %v1187 = vunpack.c.l.b16 %v821
        %v1188 = vunpack.c.h.b16 %v821
        %v1189 = vunpack.c.l.b16 %v822
        %v1190 = vunpack.c.h.b16 %v822
        %v1191 = vunpack.c.l.b16 %v823
        %v1192 = vunpack.c.h.b16 %v823
        %v1193 = vunpack.c.l.b16 %v824
        %v1194 = vunpack.c.h.b16 %v824
        %v1195 = vunpack.c.l.b16 %v825
        %v1196 = vunpack.c.h.b16 %v825
        %v1197 = vunpack.c.l.b16 %v826
        %v1198 = vunpack.c.h.b16 %v826
        %v1199 = vunpack.c.l.b16 %v827
        %v1200 = vunpack.c.h.b16 %v827
        %v1201 = vunpack.c.l.b16 %v828
        %v1202 = vunpack.c.h.b16 %v828
        %v1203 = vunpack.c.l.b16 %v829
        %v1204 = vunpack.c.h.b16 %v829
        %v1205 = vunpack.c.l.b16 %v830
        %v1206 = vunpack.c.h.b16 %v830
        %v1207 = vunpack.c.l.b16 %v831
        %v1208 = vunpack.c.h.b16 %v831
        %v1209 = vunpack.c.l.b16 %v832
        %v1210 = vunpack.c.h.b16 %v832
        %v1211 = vunpack.c.l.b16 %v833
        %v1212 = vunpack.c.h.b16 %v833
        %v1213 = vunpack.c.l.b16 %v834
        %v1214 = vunpack.c.h.b16 %v834
        %v1215 = vunpack.c.l.b16 %v835
        %v1216 = vunpack.c.h.b16 %v835
        %v1217 = vunpack.c.l.b16 %v836
        %v1218 = vunpack.c.h.b16 %v836
        %v1219 = vunpack.c.l.b16 %v837
        %v1220 = vunpack.c.h.b16 %v837
        %v1221 = vunpack.c.l.b16 %v838
        %v1222 = vunpack.c.h.b16 %v838
        %v1223 = vunpack.c.l.b16 %v839
        %v1224 = vunpack.c.h.b16 %v839
        %v1225 = vunpack.c.l.b16 %v840
        %v1226 = vunpack.c.h.b16 %v840
        %v1227 = vunpack.c.l.b16 %v841
        %v1228 = vunpack.c.h.b16 %v841
        %v1229 = vunpack.c.l.b16 %v842
        %v1230 = vunpack.c.h.b16 %v842
        %v1231 = vunpack.c.l.b16 %v843
        %v1232 = vunpack.c.h.b16 %v843
        %v1233 = vunpack.c.l.b16 %v844
        %v1234 = vunpack.c.h.b16 %v844
        %v1235 = vunpack.c.l.b16 %v845
        %v1236 = vunpack.c.h.b16 %v845
        %v1237 = vunpack.c.l.b16 %v846
        %v1238 = vunpack.c.h.b16 %v846
        %v1239 = vunpack.c.l.b16 %v847
        %v1240 = vunpack.c.h.b16 %v847
        %v1241 = vunpack.c.l.b16 %v848
        %v1242 = vunpack.c.h.b16 %v848
        %v1243 = vunpack.c.l.b16 %v849
        %v1244 = vunpack.c.h.b16 %v849
        %v1245 = vunpack.c.l.b16 %v850
        %v1246 = vunpack.c.h.b16 %v850
        %v1247 = vunpack.c.l.b16 %v851
        %v1248 = vunpack.c.h.b16 %v851
        %v1249 = vunpack.c.l.b16 %v852
        %v1250 = vunpack.c.h.b16 %v852
        %v1251 = vunpack.c.l.b16 %v853
        %v1252 = vunpack.c.h.b16 %v853
        %v1253 = vunpack.c.l.b16 %v854
        %v1254 = vunpack.c.h.b16 %v854
        %v1255 = vunpack.c.l.b16 %v855
        %v1256 = vunpack.c.h.b16 %v855
        %v1257 = vunpack.c.l.b16 %v856
        %v1258 = vunpack.c.h.b16 %v856
        %v1259 = vunpack.c.l.b16 %v857
        %v1260 = vunpack.c.h.b16 %v857
        %v1261 = vunpack.c.l.b16 %v858
        %v1262 = vunpack.c.h.b16 %v858
        %v1263 = vunpack.c.l.b16 %v859
        %v1264 = vunpack.c.h.b16 %v859
        %v1265 = vunpack.c.l.b16 %v860
        %v1266 = vunpack.c.h.b16 %v860
        %v1267 = vpack.c.b16 %v1015, %v1011
        %v1268 = vpack.c.b16 %v1016, %v1012
        %v1269 = vpack.c.b16 %v1017, %v1013
        %v1270 = vpack.c.b16 %v1018, %v1014
        %v1271 = vpack.c.b16 %v1023, %v1019
        %v1272 = vpack.c.b16 %v1024, %v1020
        %v1273 = vpack.c.b16 %v1025, %v1021
        %v1274 = vpack.c.b16 %v1026, %v1022
        %v1275 = vpack.c.b16 %v1031, %v1027
        %v1276 = vpack.c.b16 %v1032, %v1028
        %v1277 = vpack.c.b16 %v1033, %v1029
        %v1278 = vpack.c.b16 %v1034, %v1030
        %v1279 = vpack.c.b16 %v1039, %v1035
        %v1280 = vpack.c.b16 %v1040, %v1036
        %v1281 = vpack.c.b16 %v1041, %v1037
        %v1282 = vpack.c.b16 %v1042, %v1038
        %v1283 = vpack.c.b16 %v1047, %v1043
        %v1284 = vpack.c.b16 %v1048, %v1044
        %v1285 = vpack.c.b16 %v1049, %v1045
        %v1286 = vpack.c.b16 %v1050, %v1046
        %v1287 = vpack.c.b16 %v1055, %v1051
        %v1288 = vpack.c.b16 %v1056, %v1052
        %v1289 = vpack.c.b16 %v1057, %v1053
        %v1290 = vpack.c.b16 %v1058, %v1054
        %v1291 = vpack.c.b16 %v1063, %v1059
        %v1292 = vpack.c.b16 %v1064, %v1060
        %v1293 = vpack.c.b16 %v1065, %v1061
        %v1294 = vpack.c.b16 %v1066, %v1062
        %v1295 = vpack.c.b16 %v1071, %v1067
        %v1296 = vpack.c.b16 %v1072, %v1068
        %v1297 = vpack.c.b16 %v1073, %v1069
        %v1298 = vpack.c.b16 %v1074, %v1070
        %v1299 = vpack.c.b16 %v1079, %v1075
        %v1300 = vpack.c.b16 %v1080, %v1076
        %v1301 = vpack.c.b16 %v1081, %v1077
        %v1302 = vpack.c.b16 %v1082, %v1078
        %v1303 = vpack.c.b16 %v1087, %v1083
        %v1304 = vpack.c.b16 %v1088, %v1084
        %v1305 = vpack.c.b16 %v1089, %v1085
        %v1306 = vpack.c.b16 %v1090, %v1086
        %v1307 = vpack.c.b16 %v1095, %v1091
        %v1308 = vpack.c.b16 %v1096, %v1092
        %v1309 = vpack.c.b16 %v1097, %v1093
        %v1310 = vpack.c.b16 %v1098, %v1094
        %v1311 = vpack.c.b16 %v1103, %v1099
        %v1312 = vpack.c.b16 %v1104, %v1100
        %v1313 = vpack.c.b16 %v1105, %v1101
        %v1314 = vpack.c.b16 %v1106, %v1102
        %v1315 = vpack.c.b16 %v1111, %v1107
        %v1316 = vpack.c.b16 %v1112, %v1108
        %v1317 = vpack.c.b16 %v1113, %v1109
        %v1318 = vpack.c.b16 %v1114, %v1110
        %v1319 = vpack.c.b16 %v1119, %v1115
        %v1320 = vpack.c.b16 %v1120, %v1116
        %v1321 = vpack.c.b16 %v1121, %v1117
        %v1322 = vpack.c.b16 %v1122, %v1118
        %v1323 = vpack.c.b16 %v1127, %v1123
        %v1324 = vpack.c.b16 %v1128, %v1124
        %v1325 = vpack.c.b16 %v1129, %v1125
        %v1326 = vpack.c.b16 %v1130, %v1126
        %v1327 = vpack.c.b16 %v1135, %v1131
        %v1328 = vpack.c.b16 %v1136, %v1132
        %v1329 = vpack.c.b16 %v1137, %v1133
        %v1330 = vpack.c.b16 %v1138, %v1134
        %v1331 = vpack.c.b16 %v1143, %v1139
        %v1332 = vpack.c.b16 %v1144, %v1140
        %v1333 = vpack.c.b16 %v1145, %v1141
        %v1334 = vpack.c.b16 %v1146, %v1142
        %v1335 = vpack.c.b16 %v1151, %v1147
        %v1336 = vpack.c.b16 %v1152, %v1148
        %v1337 = vpack.c.b16 %v1153, %v1149
        %v1338 = vpack.c.b16 %v1154, %v1150
        %v1339 = vpack.c.b16 %v1159, %v1155
        %v1340 = vpack.c.b16 %v1160, %v1156
        %v1341 = vpack.c.b16 %v1161, %v1157
        %v1342 = vpack.c.b16 %v1162, %v1158
        %v1343 = vpack.c.b16 %v1167, %v1163
        %v1344 = vpack.c.b16 %v1168, %v1164
        %v1345 = vpack.c.b16 %v1169, %v1165
        %v1346 = vpack.c.b16 %v1170, %v1166
        %v1347 = vpack.c.b16 %v1175, %v1171
        %v1348 = vpack.c.b16 %v1176, %v1172
        %v1349 = vpack.c.b16 %v1177, %v1173
        %v1350 = vpack.c.b16 %v1178, %v1174
        %v1351 = vpack.c.b16 %v1183, %v1179
        %v1352 = vpack.c.b16 %v1184, %v1180
        %v1353 = vpack.c.b16 %v1185, %v1181
        %v1354 = vpack.c.b16 %v1186, %v1182
        %v1355 = vpack.c.b16 %v1191, %v1187
        %v1356 = vpack.c.b16 %v1192, %v1188
        %v1357 = vpack.c.b16 %v1193, %v1189
        %v1358 = vpack.c.b16 %v1194, %v1190
        %v1359 = vpack.c.b16 %v1199, %v1195
        %v1360 = vpack.c.b16 %v1200, %v1196
        %v1361 = vpack.c.b16 %v1201, %v1197
        %v1362 = vpack.c.b16 %v1202, %v1198
        %v1363 = vpack.c.b16 %v1207, %v1203
        %v1364 = vpack.c.b16 %v1208, %v1204
        %v1365 = vpack.c.b16 %v1209, %v1205
        %v1366 = vpack.c.b16 %v1210, %v1206
        %v1367 = vpack.c.b16 %v1215, %v1211
        %v1368 = vpack.c.b16 %v1216, %v1212
        %v1369 = vpack.c.b16 %v1217, %v1213
        %v1370 = vpack.c.b16 %v1218, %v1214
        %v1371 = vpack.c.b16 %v1223, %v1219
        %v1372 = vpack.c.b16 %v1224, %v1220
        %v1373 = vpack.c.b16 %v1225, %v1221
        %v1374 = vpack.c.b16 %v1226, %v1222
        %v1375 = vpack.c.b16 %v1231, %v1227
        %v1376 = vpack.c.b16 %v1232, %v1228
        %v1377 = vpack.c.b16 %v1233, %v1229
        %v1378 = vpack.c.b16 %v1234, %v1230
        %v1379 = vpack.c.b16 %v1239, %v1235
        %v1380 = vpack.c.b16 %v1240, %v1236
        %v1381 = vpack.c.b16 %v1241, %v1237
        %v1382 = vpack.c.b16 %v1242, %v1238
        %v1383 = vpack.c.b16 %v1247, %v1243
        %v1384 = vpack.c.b16 %v1248, %v1244
        %v1385 = vpack.c.b16 %v1249, %v1245
        %v1386 = vpack.c.b16 %v1250, %v1246
        %v1387 = vpack.c.b16 %v1255, %v1251
        %v1388 = vpack.c.b16 %v1256, %v1252
        %v1389 = vpack.c.b16 %v1257, %v1253
        %v1390 = vpack.c.b16 %v1258, %v1254
        %v1391 = vpack.c.b16 %v1263, %v1259
        %v1392 = vpack.c.b16 %v1264, %v1260
        %v1393 = vpack.c.b16 %v1265, %v1261
        %v1394 = vpack.c.b16 %v1266, %v1262
        %1523 = vmatprep.subr.bf16.mxu0 %v1296
        %1524 = vmatpush1.bf16.msra.mxu0 %v1295
        %1525 = vmatprep.subr.bf16.mxu0 %v1292
        %1526 = vmatpush1.bf16.msra.mxu0 %v1291
        %1527 = vmatprep.subr.bf16.mxu0 %v1288
        %1528 = vmatpush1.bf16.msra.mxu0 %v1287
        %1529 = vmatprep.subr.bf16.mxu0 %v1284
        %1530 = vmatpush1.bf16.msra.mxu0 %v1283
        %1531 = vmatprep.subr.bf16.mxu0 %v1280
        %1532 = vmatpush1.bf16.msra.mxu0 %v1279
        %1533 = vmatprep.subr.bf16.mxu0 %v1276
        %1534 = vmatpush1.bf16.msra.mxu0 %v1275
        %1535 = vmatprep.subr.bf16.mxu0 %v1272
        %1536 = vmatpush1.bf16.msra.mxu0 %v1271
        %1537 = vmatprep.subr.bf16.mxu0 %v1268
        %1538 = vmatpush1.bf16.msra.mxu0 %v1267
        %1539 = vmatprep.subr.bf16.mxu0 %v1328
        %1540 = vmatpush2.bf16.msra.mxu0 %v1327
        %1541 = vmatprep.subr.bf16.mxu0 %v1324
        %1542 = vmatpush2.bf16.msra.mxu0 %v1323
        %1543 = vmatprep.subr.bf16.mxu0 %v1320
        %1544 = vmatpush2.bf16.msra.mxu0 %v1319
        %1545 = vmatprep.subr.bf16.mxu0 %v1316
        %1546 = vmatpush2.bf16.msra.mxu0 %v1315
        %1547 = vmatprep.subr.bf16.mxu0 %v1312
        %1548 = vmatpush2.bf16.msra.mxu0 %v1311
        %1549 = vmatprep.subr.bf16.mxu0 %v1308
        %1550 = vmatpush2.bf16.msra.mxu0 %v1307
        %1551 = vmatprep.subr.bf16.mxu0 %v1304
        %1552 = vmatpush2.bf16.msra.mxu0 %v1303
        %1553 = vmatprep.subr.bf16.mxu0 %v1300
        %1554 = vmatpush2.bf16.msra.mxu0 %v1299
        %1555 = vmatprep.mubr.bf16.mxu0 %v730
        %1556 = vmatmul.mubr.bf16.gmra.mxu0 %v729
        %v1557 = vpop.f32.mrf.mxu0
        %v1558 = vadd.f32 %v866, %v1557
        %v1559 = vpop.f32.mrf.mxu0
        %v1560 = vadd.f32 %v870, %v1559
        %v1561 = vpop.f32.mrf.mxu0
        %v1562 = vadd.f32 %v866, %v1561
        %v1563 = vpop.f32.mrf.mxu0
        %v1564 = vadd.f32 %v870, %v1563
        %1565 = vdwg.mxu0
        %1566 = vmatprep.subr.bf16.mxu0 %v1360
        %1567 = vmatpush1.bf16.msra.mxu0 %v1359
        %1568 = vmatprep.subr.bf16.mxu0 %v1356
        %1569 = vmatpush1.bf16.msra.mxu0 %v1355
        %1570 = vmatprep.subr.bf16.mxu0 %v1352
        %1571 = vmatpush1.bf16.msra.mxu0 %v1351
        %1572 = vmatprep.subr.bf16.mxu0 %v1348
        %1573 = vmatpush1.bf16.msra.mxu0 %v1347
        %1574 = vmatprep.subr.bf16.mxu0 %v1344
        %1575 = vmatpush1.bf16.msra.mxu0 %v1343
        %1576 = vmatprep.subr.bf16.mxu0 %v1340
        %1577 = vmatpush1.bf16.msra.mxu0 %v1339
        %1578 = vmatprep.subr.bf16.mxu0 %v1336
        %1579 = vmatpush1.bf16.msra.mxu0 %v1335
        %1580 = vmatprep.subr.bf16.mxu0 %v1332
        %1581 = vmatpush1.bf16.msra.mxu0 %v1331
        %1582 = vmatprep.subr.bf16.mxu0 %v1392
        %1583 = vmatpush2.bf16.msra.mxu0 %v1391
        %1584 = vmatprep.subr.bf16.mxu0 %v1388
        %1585 = vmatpush2.bf16.msra.mxu0 %v1387
        %1586 = vmatprep.subr.bf16.mxu0 %v1384
        %1587 = vmatpush2.bf16.msra.mxu0 %v1383
        %1588 = vmatprep.subr.bf16.mxu0 %v1380
        %1589 = vmatpush2.bf16.msra.mxu0 %v1379
        %1590 = vmatprep.subr.bf16.mxu0 %v1376
        %1591 = vmatpush2.bf16.msra.mxu0 %v1375
        %1592 = vmatprep.subr.bf16.mxu0 %v1372
        %1593 = vmatpush2.bf16.msra.mxu0 %v1371
        %1594 = vmatprep.subr.bf16.mxu0 %v1368
        %1595 = vmatpush2.bf16.msra.mxu0 %v1367
        %1596 = vmatprep.subr.bf16.mxu0 %v1364
        %1597 = vmatpush2.bf16.msra.mxu0 %v1363
        %1598 = vmatprep.mubr.bf16.mxu0 %v732
        %1599 = vmatmul.mubr.bf16.gmra.mxu0 %v731
        %v1600 = vpop.f32.mrf.mxu0
        %v1601 = vadd.f32 %v1558, %v1600
        %v1602 = vpop.f32.mrf.mxu0
        %v1603 = vadd.f32 %v1560, %v1602
        %v1604 = vpop.f32.mrf.mxu0
        %v1605 = vadd.f32 %v1562, %v1604
        %v1606 = vpop.f32.mrf.mxu0
        %v1607 = vadd.f32 %v1564, %v1606
        %1608 = vdwg.mxu0
        %1609 = vmatprep.subr.bf16.mxu0 %v1298
        %1610 = vmatpush1.bf16.msra.mxu0 %v1297
        %1611 = vmatprep.subr.bf16.mxu0 %v1294
        %1612 = vmatpush1.bf16.msra.mxu0 %v1293
        %1613 = vmatprep.subr.bf16.mxu0 %v1290
        %1614 = vmatpush1.bf16.msra.mxu0 %v1289
        %1615 = vmatprep.subr.bf16.mxu0 %v1286
        %1616 = vmatpush1.bf16.msra.mxu0 %v1285
        %1617 = vmatprep.subr.bf16.mxu0 %v1282
        %1618 = vmatpush1.bf16.msra.mxu0 %v1281
        %1619 = vmatprep.subr.bf16.mxu0 %v1278
        %1620 = vmatpush1.bf16.msra.mxu0 %v1277
        %1621 = vmatprep.subr.bf16.mxu0 %v1274
        %1622 = vmatpush1.bf16.msra.mxu0 %v1273
        %1623 = vmatprep.subr.bf16.mxu0 %v1270
        %1624 = vmatpush1.bf16.msra.mxu0 %v1269
        %1625 = vmatprep.subr.bf16.mxu0 %v1330
        %1626 = vmatpush2.bf16.msra.mxu0 %v1329
        %1627 = vmatprep.subr.bf16.mxu0 %v1326
        %1628 = vmatpush2.bf16.msra.mxu0 %v1325
        %1629 = vmatprep.subr.bf16.mxu0 %v1322
        %1630 = vmatpush2.bf16.msra.mxu0 %v1321
        %1631 = vmatprep.subr.bf16.mxu0 %v1318
        %1632 = vmatpush2.bf16.msra.mxu0 %v1317
        %1633 = vmatprep.subr.bf16.mxu0 %v1314
        %1634 = vmatpush2.bf16.msra.mxu0 %v1313
        %1635 = vmatprep.subr.bf16.mxu0 %v1310
        %1636 = vmatpush2.bf16.msra.mxu0 %v1309
        %1637 = vmatprep.subr.bf16.mxu0 %v1306
        %1638 = vmatpush2.bf16.msra.mxu0 %v1305
        %1639 = vmatprep.subr.bf16.mxu0 %v1302
        %1640 = vmatpush2.bf16.msra.mxu0 %v1301
        %1641 = vmatprep.mubr.bf16.mxu0 %v730
        %1642 = vmatmul.mubr.bf16.gmra.mxu0 %v729
        %v1643 = vpop.f32.mrf.mxu0
        %v1644 = vadd.f32 %v874, %v1643
        %v1645 = vpop.f32.mrf.mxu0
        %v1646 = vadd.f32 %v878, %v1645
        %v1647 = vpop.f32.mrf.mxu0
        %v1648 = vadd.f32 %v874, %v1647
        %v1649 = vpop.f32.mrf.mxu0
        %v1650 = vadd.f32 %v878, %v1649
        %1651 = vdwg.mxu0
        %1652 = vmatprep.subr.bf16.mxu0 %v1362
        %1653 = vmatpush1.bf16.msra.mxu0 %v1361
        %1654 = vmatprep.subr.bf16.mxu0 %v1358
        %1655 = vmatpush1.bf16.msra.mxu0 %v1357
        %1656 = vmatprep.subr.bf16.mxu0 %v1354
        %1657 = vmatpush1.bf16.msra.mxu0 %v1353
        %1658 = vmatprep.subr.bf16.mxu0 %v1350
        %1659 = vmatpush1.bf16.msra.mxu0 %v1349
        %1660 = vmatprep.subr.bf16.mxu0 %v1346
        %1661 = vmatpush1.bf16.msra.mxu0 %v1345
        %1662 = vmatprep.subr.bf16.mxu0 %v1342
        %1663 = vmatpush1.bf16.msra.mxu0 %v1341
        %1664 = vmatprep.subr.bf16.mxu0 %v1338
        %1665 = vmatpush1.bf16.msra.mxu0 %v1337
        %1666 = vmatprep.subr.bf16.mxu0 %v1334
        %1667 = vmatpush1.bf16.msra.mxu0 %v1333
        %1668 = vmatprep.subr.bf16.mxu0 %v1394
        %1669 = vmatpush2.bf16.msra.mxu0 %v1393
        %1670 = vmatprep.subr.bf16.mxu0 %v1390
        %1671 = vmatpush2.bf16.msra.mxu0 %v1389
        %1672 = vmatprep.subr.bf16.mxu0 %v1386
        %1673 = vmatpush2.bf16.msra.mxu0 %v1385
        %1674 = vmatprep.subr.bf16.mxu0 %v1382
        %1675 = vmatpush2.bf16.msra.mxu0 %v1381
        %1676 = vmatprep.subr.bf16.mxu0 %v1378
        %1677 = vmatpush2.bf16.msra.mxu0 %v1377
        %1678 = vmatprep.subr.bf16.mxu0 %v1374
        %1679 = vmatpush2.bf16.msra.mxu0 %v1373
        %1680 = vmatprep.subr.bf16.mxu0 %v1370
        %1681 = vmatpush2.bf16.msra.mxu0 %v1369
        %1682 = vmatprep.subr.bf16.mxu0 %v1366
        %1683 = vmatpush2.bf16.msra.mxu0 %v1365
        %1684 = vmatprep.mubr.bf16.mxu0 %v732
        %1685 = vmatmul.mubr.bf16.gmra.mxu0 %v731
        %v1686 = vpop.f32.mrf.mxu0
        %v1687 = vadd.f32 %v1644, %v1686
        %v1688 = vpop.f32.mrf.mxu0
        %v1689 = vadd.f32 %v1646, %v1688
        %v1690 = vpop.f32.mrf.mxu0
        %v1691 = vadd.f32 %v1648, %v1690
        %v1692 = vpop.f32.mrf.mxu0
        %v1693 = vadd.f32 %v1650, %v1692
        %1694 = vdwg.mxu0
        %v1695 = vmax.f32 %v1601, 0.0
        %v1696 = vmax.f32 %v1603, 0.0
        %v1697 = vmax.f32 %v1687, 0.0
        %v1698 = vmax.f32 %v1689, 0.0
        %v1699 = vmax.f32 %v1605, 0.0
        %v1700 = vmax.f32 %v1607, 0.0
        %v1701 = vmax.f32 %v1691, 0.0
        %v1702 = vmax.f32 %v1693, 0.0
        %v1703 = vpack.c.bf16 %v1699, %v1695
        %v1704 = vpack.c.bf16 %v1700, %v1696
        %v1705 = vpack.c.bf16 %v1701, %v1697
        %v1706 = vpack.c.bf16 %v1702, %v1698
        %v1707 = vld [vmem:[#allocation6] sm:$0xff]
        %v1708 = vld [vmem:[#allocation6 + $0x8] sm:$0xff]
        %v1709 = vld [vmem:[#allocation6 + $0x10] sm:$0xff]
        %v1710 = vld [vmem:[#allocation6 + $0x18] sm:$0xff]
        %v1711 = vld [vmem:[#allocation6 + $0x20] sm:$0xff]
        %v1712 = vld [vmem:[#allocation6 + $0x28] sm:$0xff]
        %v1713 = vld [vmem:[#allocation6 + $0x30] sm:$0xff]
        %v1714 = vld [vmem:[#allocation6 + $0x38] sm:$0xff]
        %v1715 = vld [vmem:[#allocation6 + $0x40] sm:$0xff]
        %v1716 = vld [vmem:[#allocation6 + $0x48] sm:$0xff]
        %v1717 = vld [vmem:[#allocation6 + $0x50] sm:$0xff]
        %v1718 = vld [vmem:[#allocation6 + $0x58] sm:$0xff]
        %v1719 = vld [vmem:[#allocation6 + $0x60] sm:$0xff]
        %v1720 = vld [vmem:[#allocation6 + $0x68] sm:$0xff]
        %v1721 = vld [vmem:[#allocation6 + $0x70] sm:$0xff]
        %v1722 = vld [vmem:[#allocation6 + $0x78] sm:$0xff]
        %v1723 = vld [vmem:[#allocation6 + $0x80] sm:$0xff]
        %v1724 = vld [vmem:[#allocation6 + $0x88] sm:$0xff]
        %v1725 = vld [vmem:[#allocation6 + $0x90] sm:$0xff]
        %v1726 = vld [vmem:[#allocation6 + $0x98] sm:$0xff]
        %v1727 = vld [vmem:[#allocation6 + $0xa0] sm:$0xff]
        %v1728 = vld [vmem:[#allocation6 + $0xa8] sm:$0xff]
        %v1729 = vld [vmem:[#allocation6 + $0xb0] sm:$0xff]
        %v1730 = vld [vmem:[#allocation6 + $0xb8] sm:$0xff]
        %v1731 = vld [vmem:[#allocation6 + $0xc0] sm:$0xff]
        %v1732 = vld [vmem:[#allocation6 + $0xc8] sm:$0xff]
        %v1733 = vld [vmem:[#allocation6 + $0xd0] sm:$0xff]
        %v1734 = vld [vmem:[#allocation6 + $0xd8] sm:$0xff]
        %v1735 = vld [vmem:[#allocation6 + $0xe0] sm:$0xff]
        %v1736 = vld [vmem:[#allocation6 + $0xe8] sm:$0xff]
        %v1737 = vld [vmem:[#allocation6 + $0xf0] sm:$0xff]
        %v1738 = vld [vmem:[#allocation6 + $0xf8] sm:$0xff]
        %v1739 = vld [vmem:[#allocation6 + $0x100] sm:$0xff]
        %v1740 = vld [vmem:[#allocation6 + $0x108] sm:$0xff]
        %v1741 = vld [vmem:[#allocation6 + $0x110] sm:$0xff]
        %v1742 = vld [vmem:[#allocation6 + $0x118] sm:$0xff]
        %v1743 = vld [vmem:[#allocation6 + $0x120] sm:$0xff]
        %v1744 = vld [vmem:[#allocation6 + $0x128] sm:$0xff]
        %v1745 = vld [vmem:[#allocation6 + $0x130] sm:$0xff]
        %v1746 = vld [vmem:[#allocation6 + $0x138] sm:$0xff]
        %v1747 = vld [vmem:[#allocation6 + $0x140] sm:$0xff]
        %v1748 = vld [vmem:[#allocation6 + $0x148] sm:$0xff]
        %v1749 = vld [vmem:[#allocation6 + $0x150] sm:$0xff]
        %v1750 = vld [vmem:[#allocation6 + $0x158] sm:$0xff]
        %v1751 = vld [vmem:[#allocation6 + $0x160] sm:$0xff]
        %v1752 = vld [vmem:[#allocation6 + $0x168] sm:$0xff]
        %v1753 = vld [vmem:[#allocation6 + $0x170] sm:$0xff]
        %v1754 = vld [vmem:[#allocation6 + $0x178] sm:$0xff]
        %v1755 = vld [vmem:[#allocation6 + $0x180] sm:$0xff]
        %v1756 = vld [vmem:[#allocation6 + $0x188] sm:$0xff]
        %v1757 = vld [vmem:[#allocation6 + $0x190] sm:$0xff]
        %v1758 = vld [vmem:[#allocation6 + $0x198] sm:$0xff]
        %v1759 = vld [vmem:[#allocation6 + $0x1a0] sm:$0xff]
        %v1760 = vld [vmem:[#allocation6 + $0x1a8] sm:$0xff]
        %v1761 = vld [vmem:[#allocation6 + $0x1b0] sm:$0xff]
        %v1762 = vld [vmem:[#allocation6 + $0x1b8] sm:$0xff]
        %v1763 = vld [vmem:[#allocation6 + $0x1c0] sm:$0xff]
        %v1764 = vld [vmem:[#allocation6 + $0x1c8] sm:$0xff]
        %v1765 = vld [vmem:[#allocation6 + $0x1d0] sm:$0xff]
        %v1766 = vld [vmem:[#allocation6 + $0x1d8] sm:$0xff]
        %v1767 = vld [vmem:[#allocation6 + $0x1e0] sm:$0xff]
        %v1768 = vld [vmem:[#allocation6 + $0x1e8] sm:$0xff]
        %v1769 = vld [vmem:[#allocation6 + $0x1f0] sm:$0xff]
        %v1770 = vld [vmem:[#allocation6 + $0x1f8] sm:$0xff]
        %v1771 = vld [vmem:[#allocation6 + $0x200] sm:$0xff]
        %v1772 = vld [vmem:[#allocation6 + $0x208] sm:$0xff]
        %v1773 = vld [vmem:[#allocation6 + $0x210] sm:$0xff]
        %v1774 = vld [vmem:[#allocation6 + $0x218] sm:$0xff]
        %v1775 = vld [vmem:[#allocation6 + $0x220] sm:$0xff]
        %v1776 = vld [vmem:[#allocation6 + $0x228] sm:$0xff]
        %v1777 = vld [vmem:[#allocation6 + $0x230] sm:$0xff]
        %v1778 = vld [vmem:[#allocation6 + $0x238] sm:$0xff]
        %v1779 = vld [vmem:[#allocation6 + $0x240] sm:$0xff]
        %v1780 = vld [vmem:[#allocation6 + $0x248] sm:$0xff]
        %v1781 = vld [vmem:[#allocation6 + $0x250] sm:$0xff]
        %v1782 = vld [vmem:[#allocation6 + $0x258] sm:$0xff]
        %v1783 = vld [vmem:[#allocation6 + $0x260] sm:$0xff]
        %v1784 = vld [vmem:[#allocation6 + $0x268] sm:$0xff]
        %v1785 = vld [vmem:[#allocation6 + $0x270] sm:$0xff]
        %v1786 = vld [vmem:[#allocation6 + $0x278] sm:$0xff]
        %v1787 = vld [vmem:[#allocation6 + $0x280] sm:$0xff]
        %v1788 = vld [vmem:[#allocation6 + $0x288] sm:$0xff]
        %v1789 = vld [vmem:[#allocation6 + $0x290] sm:$0xff]
        %v1790 = vld [vmem:[#allocation6 + $0x298] sm:$0xff]
        %v1791 = vld [vmem:[#allocation6 + $0x2a0] sm:$0xff]
        %v1792 = vld [vmem:[#allocation6 + $0x2a8] sm:$0xff]
        %v1793 = vld [vmem:[#allocation6 + $0x2b0] sm:$0xff]
        %v1794 = vld [vmem:[#allocation6 + $0x2b8] sm:$0xff]
        %v1795 = vld [vmem:[#allocation6 + $0x2c0] sm:$0xff]
        %v1796 = vld [vmem:[#allocation6 + $0x2c8] sm:$0xff]
        %v1797 = vld [vmem:[#allocation6 + $0x2d0] sm:$0xff]
        %v1798 = vld [vmem:[#allocation6 + $0x2d8] sm:$0xff]
        %v1799 = vld [vmem:[#allocation6 + $0x2e0] sm:$0xff]
        %v1800 = vld [vmem:[#allocation6 + $0x2e8] sm:$0xff]
        %v1801 = vld [vmem:[#allocation6 + $0x2f0] sm:$0xff]
        %v1802 = vld [vmem:[#allocation6 + $0x2f8] sm:$0xff]
        %v1803 = vld [vmem:[#allocation6 + $0x300] sm:$0xff]
        %v1804 = vld [vmem:[#allocation6 + $0x308] sm:$0xff]
        %v1805 = vld [vmem:[#allocation6 + $0x310] sm:$0xff]
        %v1806 = vld [vmem:[#allocation6 + $0x318] sm:$0xff]
        %v1807 = vld [vmem:[#allocation6 + $0x320] sm:$0xff]
        %v1808 = vld [vmem:[#allocation6 + $0x328] sm:$0xff]
        %v1809 = vld [vmem:[#allocation6 + $0x330] sm:$0xff]
        %v1810 = vld [vmem:[#allocation6 + $0x338] sm:$0xff]
        %v1811 = vld [vmem:[#allocation6 + $0x340] sm:$0xff]
        %v1812 = vld [vmem:[#allocation6 + $0x348] sm:$0xff]
        %v1813 = vld [vmem:[#allocation6 + $0x350] sm:$0xff]
        %v1814 = vld [vmem:[#allocation6 + $0x358] sm:$0xff]
        %v1815 = vld [vmem:[#allocation6 + $0x360] sm:$0xff]
        %v1816 = vld [vmem:[#allocation6 + $0x368] sm:$0xff]
        %v1817 = vld [vmem:[#allocation6 + $0x370] sm:$0xff]
        %v1818 = vld [vmem:[#allocation6 + $0x378] sm:$0xff]
        %v1819 = vld [vmem:[#allocation6 + $0x380] sm:$0xff]
        %v1820 = vld [vmem:[#allocation6 + $0x388] sm:$0xff]
        %v1821 = vld [vmem:[#allocation6 + $0x390] sm:$0xff]
        %v1822 = vld [vmem:[#allocation6 + $0x398] sm:$0xff]
        %v1823 = vld [vmem:[#allocation6 + $0x3a0] sm:$0xff]
        %v1824 = vld [vmem:[#allocation6 + $0x3a8] sm:$0xff]
        %v1825 = vld [vmem:[#allocation6 + $0x3b0] sm:$0xff]
        %v1826 = vld [vmem:[#allocation6 + $0x3b8] sm:$0xff]
        %v1827 = vld [vmem:[#allocation6 + $0x3c0] sm:$0xff]
        %v1828 = vld [vmem:[#allocation6 + $0x3c8] sm:$0xff]
        %v1829 = vld [vmem:[#allocation6 + $0x3d0] sm:$0xff]
        %v1830 = vld [vmem:[#allocation6 + $0x3d8] sm:$0xff]
        %v1831 = vld [vmem:[#allocation6 + $0x3e0] sm:$0xff]
        %v1832 = vld [vmem:[#allocation6 + $0x3e8] sm:$0xff]
        %v1833 = vld [vmem:[#allocation6 + $0x3f0] sm:$0xff]
        %v1834 = vld [vmem:[#allocation6 + $0x3f8] sm:$0xff]
        %v1835 = vld [vmem:[%s6] sm:$0xf]
        %v1837 = vlaneseq
        %v1838 = vshrl.u32 %v1837, 7
        %v1839 = vsub.s32 0, %v1838
        %v1840 = vrot.slane %v1835, %v1839
        %v1841 = vlaneseq
        %v1842 = vshrl.u32 %v1841, 7
        %v1843 = vsub.s32 1, %v1842
        %v1844 = vrot.slane %v1835, %v1843
        %v1845 = vlaneseq
        %v1846 = vshrl.u32 %v1845, 7
        %v1847 = vsub.s32 2, %v1846
        %v1848 = vrot.slane %v1835, %v1847
        %v1849 = vlaneseq
        %v1850 = vshrl.u32 %v1849, 7
        %v1851 = vsub.s32 3, %v1850
        %v1852 = vrot.slane %v1835, %v1851
        %v1985 = vunpack.c.l.b16 %v1707
        %v1986 = vunpack.c.h.b16 %v1707
        %v1987 = vunpack.c.l.b16 %v1708
        %v1988 = vunpack.c.h.b16 %v1708
        %v1989 = vunpack.c.l.b16 %v1709
        %v1990 = vunpack.c.h.b16 %v1709
        %v1991 = vunpack.c.l.b16 %v1710
        %v1992 = vunpack.c.h.b16 %v1710
        %v1993 = vunpack.c.l.b16 %v1711
        %v1994 = vunpack.c.h.b16 %v1711
        %v1995 = vunpack.c.l.b16 %v1712
        %v1996 = vunpack.c.h.b16 %v1712
        %v1997 = vunpack.c.l.b16 %v1713
        %v1998 = vunpack.c.h.b16 %v1713
        %v1999 = vunpack.c.l.b16 %v1714
        %v2000 = vunpack.c.h.b16 %v1714
        %v2001 = vunpack.c.l.b16 %v1715
        %v2002 = vunpack.c.h.b16 %v1715
        %v2003 = vunpack.c.l.b16 %v1716
        %v2004 = vunpack.c.h.b16 %v1716
        %v2005 = vunpack.c.l.b16 %v1717
        %v2006 = vunpack.c.h.b16 %v1717
        %v2007 = vunpack.c.l.b16 %v1718
        %v2008 = vunpack.c.h.b16 %v1718
        %v2009 = vunpack.c.l.b16 %v1719
        %v2010 = vunpack.c.h.b16 %v1719
        %v2011 = vunpack.c.l.b16 %v1720
        %v2012 = vunpack.c.h.b16 %v1720
        %v2013 = vunpack.c.l.b16 %v1721
        %v2014 = vunpack.c.h.b16 %v1721
        %v2015 = vunpack.c.l.b16 %v1722
        %v2016 = vunpack.c.h.b16 %v1722
        %v2017 = vunpack.c.l.b16 %v1723
        %v2018 = vunpack.c.h.b16 %v1723
        %v2019 = vunpack.c.l.b16 %v1724
        %v2020 = vunpack.c.h.b16 %v1724
        %v2021 = vunpack.c.l.b16 %v1725
        %v2022 = vunpack.c.h.b16 %v1725
        %v2023 = vunpack.c.l.b16 %v1726
        %v2024 = vunpack.c.h.b16 %v1726
        %v2025 = vunpack.c.l.b16 %v1727
        %v2026 = vunpack.c.h.b16 %v1727
        %v2027 = vunpack.c.l.b16 %v1728
        %v2028 = vunpack.c.h.b16 %v1728
        %v2029 = vunpack.c.l.b16 %v1729
        %v2030 = vunpack.c.h.b16 %v1729
        %v2031 = vunpack.c.l.b16 %v1730
        %v2032 = vunpack.c.h.b16 %v1730
        %v2033 = vunpack.c.l.b16 %v1731
        %v2034 = vunpack.c.h.b16 %v1731
        %v2035 = vunpack.c.l.b16 %v1732
        %v2036 = vunpack.c.h.b16 %v1732
        %v2037 = vunpack.c.l.b16 %v1733
        %v2038 = vunpack.c.h.b16 %v1733
        %v2039 = vunpack.c.l.b16 %v1734
        %v2040 = vunpack.c.h.b16 %v1734
        %v2041 = vunpack.c.l.b16 %v1735
        %v2042 = vunpack.c.h.b16 %v1735
        %v2043 = vunpack.c.l.b16 %v1736
        %v2044 = vunpack.c.h.b16 %v1736
        %v2045 = vunpack.c.l.b16 %v1737
        %v2046 = vunpack.c.h.b16 %v1737
        %v2047 = vunpack.c.l.b16 %v1738
        %v2048 = vunpack.c.h.b16 %v1738
        %v2049 = vunpack.c.l.b16 %v1739
        %v2050 = vunpack.c.h.b16 %v1739
        %v2051 = vunpack.c.l.b16 %v1740
        %v2052 = vunpack.c.h.b16 %v1740
        %v2053 = vunpack.c.l.b16 %v1741
        %v2054 = vunpack.c.h.b16 %v1741
        %v2055 = vunpack.c.l.b16 %v1742
        %v2056 = vunpack.c.h.b16 %v1742
        %v2057 = vunpack.c.l.b16 %v1743
        %v2058 = vunpack.c.h.b16 %v1743
        %v2059 = vunpack.c.l.b16 %v1744
        %v2060 = vunpack.c.h.b16 %v1744
        %v2061 = vunpack.c.l.b16 %v1745
        %v2062 = vunpack.c.h.b16 %v1745
        %v2063 = vunpack.c.l.b16 %v1746
        %v2064 = vunpack.c.h.b16 %v1746
        %v2065 = vunpack.c.l.b16 %v1747
        %v2066 = vunpack.c.h.b16 %v1747
        %v2067 = vunpack.c.l.b16 %v1748
        %v2068 = vunpack.c.h.b16 %v1748
        %v2069 = vunpack.c.l.b16 %v1749
        %v2070 = vunpack.c.h.b16 %v1749
        %v2071 = vunpack.c.l.b16 %v1750
        %v2072 = vunpack.c.h.b16 %v1750
        %v2073 = vunpack.c.l.b16 %v1751
        %v2074 = vunpack.c.h.b16 %v1751
        %v2075 = vunpack.c.l.b16 %v1752
        %v2076 = vunpack.c.h.b16 %v1752
        %v2077 = vunpack.c.l.b16 %v1753
        %v2078 = vunpack.c.h.b16 %v1753
        %v2079 = vunpack.c.l.b16 %v1754
        %v2080 = vunpack.c.h.b16 %v1754
        %v2081 = vunpack.c.l.b16 %v1755
        %v2082 = vunpack.c.h.b16 %v1755
        %v2083 = vunpack.c.l.b16 %v1756
        %v2084 = vunpack.c.h.b16 %v1756
        %v2085 = vunpack.c.l.b16 %v1757
        %v2086 = vunpack.c.h.b16 %v1757
        %v2087 = vunpack.c.l.b16 %v1758
        %v2088 = vunpack.c.h.b16 %v1758
        %v2089 = vunpack.c.l.b16 %v1759
        %v2090 = vunpack.c.h.b16 %v1759
        %v2091 = vunpack.c.l.b16 %v1760
        %v2092 = vunpack.c.h.b16 %v1760
        %v2093 = vunpack.c.l.b16 %v1761
        %v2094 = vunpack.c.h.b16 %v1761
        %v2095 = vunpack.c.l.b16 %v1762
        %v2096 = vunpack.c.h.b16 %v1762
        %v2097 = vunpack.c.l.b16 %v1763
        %v2098 = vunpack.c.h.b16 %v1763
        %v2099 = vunpack.c.l.b16 %v1764
        %v2100 = vunpack.c.h.b16 %v1764
        %v2101 = vunpack.c.l.b16 %v1765
        %v2102 = vunpack.c.h.b16 %v1765
        %v2103 = vunpack.c.l.b16 %v1766
        %v2104 = vunpack.c.h.b16 %v1766
        %v2105 = vunpack.c.l.b16 %v1767
        %v2106 = vunpack.c.h.b16 %v1767
        %v2107 = vunpack.c.l.b16 %v1768
        %v2108 = vunpack.c.h.b16 %v1768
        %v2109 = vunpack.c.l.b16 %v1769
        %v2110 = vunpack.c.h.b16 %v1769
        %v2111 = vunpack.c.l.b16 %v1770
        %v2112 = vunpack.c.h.b16 %v1770
        %v2113 = vunpack.c.l.b16 %v1771
        %v2114 = vunpack.c.h.b16 %v1771
        %v2115 = vunpack.c.l.b16 %v1772
        %v2116 = vunpack.c.h.b16 %v1772
        %v2117 = vunpack.c.l.b16 %v1773
        %v2118 = vunpack.c.h.b16 %v1773
        %v2119 = vunpack.c.l.b16 %v1774
        %v2120 = vunpack.c.h.b16 %v1774
        %v2121 = vunpack.c.l.b16 %v1775
        %v2122 = vunpack.c.h.b16 %v1775
        %v2123 = vunpack.c.l.b16 %v1776
        %v2124 = vunpack.c.h.b16 %v1776
        %v2125 = vunpack.c.l.b16 %v1777
        %v2126 = vunpack.c.h.b16 %v1777
        %v2127 = vunpack.c.l.b16 %v1778
        %v2128 = vunpack.c.h.b16 %v1778
        %v2129 = vunpack.c.l.b16 %v1779
        %v2130 = vunpack.c.h.b16 %v1779
        %v2131 = vunpack.c.l.b16 %v1780
        %v2132 = vunpack.c.h.b16 %v1780
        %v2133 = vunpack.c.l.b16 %v1781
        %v2134 = vunpack.c.h.b16 %v1781
        %v2135 = vunpack.c.l.b16 %v1782
        %v2136 = vunpack.c.h.b16 %v1782
        %v2137 = vunpack.c.l.b16 %v1783
        %v2138 = vunpack.c.h.b16 %v1783
        %v2139 = vunpack.c.l.b16 %v1784
        %v2140 = vunpack.c.h.b16 %v1784
        %v2141 = vunpack.c.l.b16 %v1785
        %v2142 = vunpack.c.h.b16 %v1785
        %v2143 = vunpack.c.l.b16 %v1786
        %v2144 = vunpack.c.h.b16 %v1786
        %v2145 = vunpack.c.l.b16 %v1787
        %v2146 = vunpack.c.h.b16 %v1787
        %v2147 = vunpack.c.l.b16 %v1788
        %v2148 = vunpack.c.h.b16 %v1788
        %v2149 = vunpack.c.l.b16 %v1789
        %v2150 = vunpack.c.h.b16 %v1789
        %v2151 = vunpack.c.l.b16 %v1790
        %v2152 = vunpack.c.h.b16 %v1790
        %v2153 = vunpack.c.l.b16 %v1791
        %v2154 = vunpack.c.h.b16 %v1791
        %v2155 = vunpack.c.l.b16 %v1792
        %v2156 = vunpack.c.h.b16 %v1792
        %v2157 = vunpack.c.l.b16 %v1793
        %v2158 = vunpack.c.h.b16 %v1793
        %v2159 = vunpack.c.l.b16 %v1794
        %v2160 = vunpack.c.h.b16 %v1794
        %v2161 = vunpack.c.l.b16 %v1795
        %v2162 = vunpack.c.h.b16 %v1795
        %v2163 = vunpack.c.l.b16 %v1796
        %v2164 = vunpack.c.h.b16 %v1796
        %v2165 = vunpack.c.l.b16 %v1797
        %v2166 = vunpack.c.h.b16 %v1797
        %v2167 = vunpack.c.l.b16 %v1798
        %v2168 = vunpack.c.h.b16 %v1798
        %v2169 = vunpack.c.l.b16 %v1799
        %v2170 = vunpack.c.h.b16 %v1799
        %v2171 = vunpack.c.l.b16 %v1800
        %v2172 = vunpack.c.h.b16 %v1800
        %v2173 = vunpack.c.l.b16 %v1801
        %v2174 = vunpack.c.h.b16 %v1801
        %v2175 = vunpack.c.l.b16 %v1802
        %v2176 = vunpack.c.h.b16 %v1802
        %v2177 = vunpack.c.l.b16 %v1803
        %v2178 = vunpack.c.h.b16 %v1803
        %v2179 = vunpack.c.l.b16 %v1804
        %v2180 = vunpack.c.h.b16 %v1804
        %v2181 = vunpack.c.l.b16 %v1805
        %v2182 = vunpack.c.h.b16 %v1805
        %v2183 = vunpack.c.l.b16 %v1806
        %v2184 = vunpack.c.h.b16 %v1806
        %v2185 = vunpack.c.l.b16 %v1807
        %v2186 = vunpack.c.h.b16 %v1807
        %v2187 = vunpack.c.l.b16 %v1808
        %v2188 = vunpack.c.h.b16 %v1808
        %v2189 = vunpack.c.l.b16 %v1809
        %v2190 = vunpack.c.h.b16 %v1809
        %v2191 = vunpack.c.l.b16 %v1810
        %v2192 = vunpack.c.h.b16 %v1810
        %v2193 = vunpack.c.l.b16 %v1811
        %v2194 = vunpack.c.h.b16 %v1811
        %v2195 = vunpack.c.l.b16 %v1812
        %v2196 = vunpack.c.h.b16 %v1812
        %v2197 = vunpack.c.l.b16 %v1813
        %v2198 = vunpack.c.h.b16 %v1813
        %v2199 = vunpack.c.l.b16 %v1814
        %v2200 = vunpack.c.h.b16 %v1814
        %v2201 = vunpack.c.l.b16 %v1815
        %v2202 = vunpack.c.h.b16 %v1815
        %v2203 = vunpack.c.l.b16 %v1816
        %v2204 = vunpack.c.h.b16 %v1816
        %v2205 = vunpack.c.l.b16 %v1817
        %v2206 = vunpack.c.h.b16 %v1817
        %v2207 = vunpack.c.l.b16 %v1818
        %v2208 = vunpack.c.h.b16 %v1818
        %v2209 = vunpack.c.l.b16 %v1819
        %v2210 = vunpack.c.h.b16 %v1819
        %v2211 = vunpack.c.l.b16 %v1820
        %v2212 = vunpack.c.h.b16 %v1820
        %v2213 = vunpack.c.l.b16 %v1821
        %v2214 = vunpack.c.h.b16 %v1821
        %v2215 = vunpack.c.l.b16 %v1822
        %v2216 = vunpack.c.h.b16 %v1822
        %v2217 = vunpack.c.l.b16 %v1823
        %v2218 = vunpack.c.h.b16 %v1823
        %v2219 = vunpack.c.l.b16 %v1824
        %v2220 = vunpack.c.h.b16 %v1824
        %v2221 = vunpack.c.l.b16 %v1825
        %v2222 = vunpack.c.h.b16 %v1825
        %v2223 = vunpack.c.l.b16 %v1826
        %v2224 = vunpack.c.h.b16 %v1826
        %v2225 = vunpack.c.l.b16 %v1827
        %v2226 = vunpack.c.h.b16 %v1827
        %v2227 = vunpack.c.l.b16 %v1828
        %v2228 = vunpack.c.h.b16 %v1828
        %v2229 = vunpack.c.l.b16 %v1829
        %v2230 = vunpack.c.h.b16 %v1829
        %v2231 = vunpack.c.l.b16 %v1830
        %v2232 = vunpack.c.h.b16 %v1830
        %v2233 = vunpack.c.l.b16 %v1831
        %v2234 = vunpack.c.h.b16 %v1831
        %v2235 = vunpack.c.l.b16 %v1832
        %v2236 = vunpack.c.h.b16 %v1832
        %v2237 = vunpack.c.l.b16 %v1833
        %v2238 = vunpack.c.h.b16 %v1833
        %v2239 = vunpack.c.l.b16 %v1834
        %v2240 = vunpack.c.h.b16 %v1834
        %v2241 = vpack.c.b16 %v1989, %v1985
        %v2242 = vpack.c.b16 %v1990, %v1986
        %v2243 = vpack.c.b16 %v1991, %v1987
        %v2244 = vpack.c.b16 %v1992, %v1988
        %v2245 = vpack.c.b16 %v1997, %v1993
        %v2246 = vpack.c.b16 %v1998, %v1994
        %v2247 = vpack.c.b16 %v1999, %v1995
        %v2248 = vpack.c.b16 %v2000, %v1996
        %v2249 = vpack.c.b16 %v2005, %v2001
        %v2250 = vpack.c.b16 %v2006, %v2002
        %v2251 = vpack.c.b16 %v2007, %v2003
        %v2252 = vpack.c.b16 %v2008, %v2004
        %v2253 = vpack.c.b16 %v2013, %v2009
        %v2254 = vpack.c.b16 %v2014, %v2010
        %v2255 = vpack.c.b16 %v2015, %v2011
        %v2256 = vpack.c.b16 %v2016, %v2012
        %v2257 = vpack.c.b16 %v2021, %v2017
        %v2258 = vpack.c.b16 %v2022, %v2018
        %v2259 = vpack.c.b16 %v2023, %v2019
        %v2260 = vpack.c.b16 %v2024, %v2020
        %v2261 = vpack.c.b16 %v2029, %v2025
        %v2262 = vpack.c.b16 %v2030, %v2026
        %v2263 = vpack.c.b16 %v2031, %v2027
        %v2264 = vpack.c.b16 %v2032, %v2028
        %v2265 = vpack.c.b16 %v2037, %v2033
        %v2266 = vpack.c.b16 %v2038, %v2034
        %v2267 = vpack.c.b16 %v2039, %v2035
        %v2268 = vpack.c.b16 %v2040, %v2036
        %v2269 = vpack.c.b16 %v2045, %v2041
        %v2270 = vpack.c.b16 %v2046, %v2042
        %v2271 = vpack.c.b16 %v2047, %v2043
        %v2272 = vpack.c.b16 %v2048, %v2044
        %v2273 = vpack.c.b16 %v2053, %v2049
        %v2274 = vpack.c.b16 %v2054, %v2050
        %v2275 = vpack.c.b16 %v2055, %v2051
        %v2276 = vpack.c.b16 %v2056, %v2052
        %v2277 = vpack.c.b16 %v2061, %v2057
        %v2278 = vpack.c.b16 %v2062, %v2058
        %v2279 = vpack.c.b16 %v2063, %v2059
        %v2280 = vpack.c.b16 %v2064, %v2060
        %v2281 = vpack.c.b16 %v2069, %v2065
        %v2282 = vpack.c.b16 %v2070, %v2066
        %v2283 = vpack.c.b16 %v2071, %v2067
        %v2284 = vpack.c.b16 %v2072, %v2068
        %v2285 = vpack.c.b16 %v2077, %v2073
        %v2286 = vpack.c.b16 %v2078, %v2074
        %v2287 = vpack.c.b16 %v2079, %v2075
        %v2288 = vpack.c.b16 %v2080, %v2076
        %v2289 = vpack.c.b16 %v2085, %v2081
        %v2290 = vpack.c.b16 %v2086, %v2082
        %v2291 = vpack.c.b16 %v2087, %v2083
        %v2292 = vpack.c.b16 %v2088, %v2084
        %v2293 = vpack.c.b16 %v2093, %v2089
        %v2294 = vpack.c.b16 %v2094, %v2090
        %v2295 = vpack.c.b16 %v2095, %v2091
        %v2296 = vpack.c.b16 %v2096, %v2092
        %v2297 = vpack.c.b16 %v2101, %v2097
        %v2298 = vpack.c.b16 %v2102, %v2098
        %v2299 = vpack.c.b16 %v2103, %v2099
        %v2300 = vpack.c.b16 %v2104, %v2100
        %v2301 = vpack.c.b16 %v2109, %v2105
        %v2302 = vpack.c.b16 %v2110, %v2106
        %v2303 = vpack.c.b16 %v2111, %v2107
        %v2304 = vpack.c.b16 %v2112, %v2108
        %v2305 = vpack.c.b16 %v2117, %v2113
        %v2306 = vpack.c.b16 %v2118, %v2114
        %v2307 = vpack.c.b16 %v2119, %v2115
        %v2308 = vpack.c.b16 %v2120, %v2116
        %v2309 = vpack.c.b16 %v2125, %v2121
        %v2310 = vpack.c.b16 %v2126, %v2122
        %v2311 = vpack.c.b16 %v2127, %v2123
        %v2312 = vpack.c.b16 %v2128, %v2124
        %v2313 = vpack.c.b16 %v2133, %v2129
        %v2314 = vpack.c.b16 %v2134, %v2130
        %v2315 = vpack.c.b16 %v2135, %v2131
        %v2316 = vpack.c.b16 %v2136, %v2132
        %v2317 = vpack.c.b16 %v2141, %v2137
        %v2318 = vpack.c.b16 %v2142, %v2138
        %v2319 = vpack.c.b16 %v2143, %v2139
        %v2320 = vpack.c.b16 %v2144, %v2140
        %v2321 = vpack.c.b16 %v2149, %v2145
        %v2322 = vpack.c.b16 %v2150, %v2146
        %v2323 = vpack.c.b16 %v2151, %v2147
        %v2324 = vpack.c.b16 %v2152, %v2148
        %v2325 = vpack.c.b16 %v2157, %v2153
        %v2326 = vpack.c.b16 %v2158, %v2154
        %v2327 = vpack.c.b16 %v2159, %v2155
        %v2328 = vpack.c.b16 %v2160, %v2156
        %v2329 = vpack.c.b16 %v2165, %v2161
        %v2330 = vpack.c.b16 %v2166, %v2162
        %v2331 = vpack.c.b16 %v2167, %v2163
        %v2332 = vpack.c.b16 %v2168, %v2164
        %v2333 = vpack.c.b16 %v2173, %v2169
        %v2334 = vpack.c.b16 %v2174, %v2170
        %v2335 = vpack.c.b16 %v2175, %v2171
        %v2336 = vpack.c.b16 %v2176, %v2172
        %v2337 = vpack.c.b16 %v2181, %v2177
        %v2338 = vpack.c.b16 %v2182, %v2178
        %v2339 = vpack.c.b16 %v2183, %v2179
        %v2340 = vpack.c.b16 %v2184, %v2180
        %v2341 = vpack.c.b16 %v2189, %v2185
        %v2342 = vpack.c.b16 %v2190, %v2186
        %v2343 = vpack.c.b16 %v2191, %v2187
        %v2344 = vpack.c.b16 %v2192, %v2188
        %v2345 = vpack.c.b16 %v2197, %v2193
        %v2346 = vpack.c.b16 %v2198, %v2194
        %v2347 = vpack.c.b16 %v2199, %v2195
        %v2348 = vpack.c.b16 %v2200, %v2196
        %v2349 = vpack.c.b16 %v2205, %v2201
        %v2350 = vpack.c.b16 %v2206, %v2202
        %v2351 = vpack.c.b16 %v2207, %v2203
        %v2352 = vpack.c.b16 %v2208, %v2204
        %v2353 = vpack.c.b16 %v2213, %v2209
        %v2354 = vpack.c.b16 %v2214, %v2210
        %v2355 = vpack.c.b16 %v2215, %v2211
        %v2356 = vpack.c.b16 %v2216, %v2212
        %v2357 = vpack.c.b16 %v2221, %v2217
        %v2358 = vpack.c.b16 %v2222, %v2218
        %v2359 = vpack.c.b16 %v2223, %v2219
        %v2360 = vpack.c.b16 %v2224, %v2220
        %v2361 = vpack.c.b16 %v2229, %v2225
        %v2362 = vpack.c.b16 %v2230, %v2226
        %v2363 = vpack.c.b16 %v2231, %v2227
        %v2364 = vpack.c.b16 %v2232, %v2228
        %v2365 = vpack.c.b16 %v2237, %v2233
        %v2366 = vpack.c.b16 %v2238, %v2234
        %v2367 = vpack.c.b16 %v2239, %v2235
        %v2368 = vpack.c.b16 %v2240, %v2236
        %2497 = vmatprep.subr.bf16.mxu0 %v2270
        %2498 = vmatpush1.bf16.msra.mxu0 %v2269
        %2499 = vmatprep.subr.bf16.mxu0 %v2266
        %2500 = vmatpush1.bf16.msra.mxu0 %v2265
        %2501 = vmatprep.subr.bf16.mxu0 %v2262
        %2502 = vmatpush1.bf16.msra.mxu0 %v2261
        %2503 = vmatprep.subr.bf16.mxu0 %v2258
        %2504 = vmatpush1.bf16.msra.mxu0 %v2257
        %2505 = vmatprep.subr.bf16.mxu0 %v2254
        %2506 = vmatpush1.bf16.msra.mxu0 %v2253
        %2507 = vmatprep.subr.bf16.mxu0 %v2250
        %2508 = vmatpush1.bf16.msra.mxu0 %v2249
        %2509 = vmatprep.subr.bf16.mxu0 %v2246
        %2510 = vmatpush1.bf16.msra.mxu0 %v2245
        %2511 = vmatprep.subr.bf16.mxu0 %v2242
        %2512 = vmatpush1.bf16.msra.mxu0 %v2241
        %2513 = vmatprep.subr.bf16.mxu0 %v2302
        %2514 = vmatpush2.bf16.msra.mxu0 %v2301
        %2515 = vmatprep.subr.bf16.mxu0 %v2298
        %2516 = vmatpush2.bf16.msra.mxu0 %v2297
        %2517 = vmatprep.subr.bf16.mxu0 %v2294
        %2518 = vmatpush2.bf16.msra.mxu0 %v2293
        %2519 = vmatprep.subr.bf16.mxu0 %v2290
        %2520 = vmatpush2.bf16.msra.mxu0 %v2289
        %2521 = vmatprep.subr.bf16.mxu0 %v2286
        %2522 = vmatpush2.bf16.msra.mxu0 %v2285
        %2523 = vmatprep.subr.bf16.mxu0 %v2282
        %2524 = vmatpush2.bf16.msra.mxu0 %v2281
        %2525 = vmatprep.subr.bf16.mxu0 %v2278
        %2526 = vmatpush2.bf16.msra.mxu0 %v2277
        %2527 = vmatprep.subr.bf16.mxu0 %v2274
        %2528 = vmatpush2.bf16.msra.mxu0 %v2273
        %2529 = vmatprep.mubr.bf16.mxu0 %v1704
        %2530 = vmatmul.mubr.bf16.gmra.mxu0 %v1703
        %v2531 = vpop.f32.mrf.mxu0
        %v2532 = vadd.f32 %v1840, %v2531
        %v2533 = vpop.f32.mrf.mxu0
        %v2534 = vadd.f32 %v1844, %v2533
        %v2535 = vpop.f32.mrf.mxu0
        %v2536 = vadd.f32 %v1840, %v2535
        %v2537 = vpop.f32.mrf.mxu0
        %v2538 = vadd.f32 %v1844, %v2537
        %2539 = vdwg.mxu0
        %2540 = vmatprep.subr.bf16.mxu0 %v2334
        %2541 = vmatpush1.bf16.msra.mxu0 %v2333
        %2542 = vmatprep.subr.bf16.mxu0 %v2330
        %2543 = vmatpush1.bf16.msra.mxu0 %v2329
        %2544 = vmatprep.subr.bf16.mxu0 %v2326
        %2545 = vmatpush1.bf16.msra.mxu0 %v2325
        %2546 = vmatprep.subr.bf16.mxu0 %v2322
        %2547 = vmatpush1.bf16.msra.mxu0 %v2321
        %2548 = vmatprep.subr.bf16.mxu0 %v2318
        %2549 = vmatpush1.bf16.msra.mxu0 %v2317
        %2550 = vmatprep.subr.bf16.mxu0 %v2314
        %2551 = vmatpush1.bf16.msra.mxu0 %v2313
        %2552 = vmatprep.subr.bf16.mxu0 %v2310
        %2553 = vmatpush1.bf16.msra.mxu0 %v2309
        %2554 = vmatprep.subr.bf16.mxu0 %v2306
        %2555 = vmatpush1.bf16.msra.mxu0 %v2305
        %2556 = vmatprep.subr.bf16.mxu0 %v2366
        %2557 = vmatpush2.bf16.msra.mxu0 %v2365
        %2558 = vmatprep.subr.bf16.mxu0 %v2362
        %2559 = vmatpush2.bf16.msra.mxu0 %v2361
        %2560 = vmatprep.subr.bf16.mxu0 %v2358
        %2561 = vmatpush2.bf16.msra.mxu0 %v2357
        %2562 = vmatprep.subr.bf16.mxu0 %v2354
        %2563 = vmatpush2.bf16.msra.mxu0 %v2353
        %2564 = vmatprep.subr.bf16.mxu0 %v2350
        %2565 = vmatpush2.bf16.msra.mxu0 %v2349
        %2566 = vmatprep.subr.bf16.mxu0 %v2346
        %2567 = vmatpush2.bf16.msra.mxu0 %v2345
        %2568 = vmatprep.subr.bf16.mxu0 %v2342
        %2569 = vmatpush2.bf16.msra.mxu0 %v2341
        %2570 = vmatprep.subr.bf16.mxu0 %v2338
        %2571 = vmatpush2.bf16.msra.mxu0 %v2337
        %2572 = vmatprep.mubr.bf16.mxu0 %v1706
        %2573 = vmatmul.mubr.bf16.gmra.mxu0 %v1705
        %v2574 = vpop.f32.mrf.mxu0
        %v2575 = vadd.f32 %v2532, %v2574
        %v2576 = vpop.f32.mrf.mxu0
        %v2577 = vadd.f32 %v2534, %v2576
        %v2578 = vpop.f32.mrf.mxu0
        %v2579 = vadd.f32 %v2536, %v2578
        %v2580 = vpop.f32.mrf.mxu0
        %v2581 = vadd.f32 %v2538, %v2580
        %2582 = vdwg.mxu0
        %2583 = vmatprep.subr.bf16.mxu0 %v2272
        %2584 = vmatpush1.bf16.msra.mxu0 %v2271
        %2585 = vmatprep.subr.bf16.mxu0 %v2268
        %2586 = vmatpush1.bf16.msra.mxu0 %v2267
        %2587 = vmatprep.subr.bf16.mxu0 %v2264
        %2588 = vmatpush1.bf16.msra.mxu0 %v2263
        %2589 = vmatprep.subr.bf16.mxu0 %v2260
        %2590 = vmatpush1.bf16.msra.mxu0 %v2259
        %2591 = vmatprep.subr.bf16.mxu0 %v2256
        %2592 = vmatpush1.bf16.msra.mxu0 %v2255
        %2593 = vmatprep.subr.bf16.mxu0 %v2252
        %2594 = vmatpush1.bf16.msra.mxu0 %v2251
        %2595 = vmatprep.subr.bf16.mxu0 %v2248
        %2596 = vmatpush1.bf16.msra.mxu0 %v2247
        %2597 = vmatprep.subr.bf16.mxu0 %v2244
        %2598 = vmatpush1.bf16.msra.mxu0 %v2243
        %2599 = vmatprep.subr.bf16.mxu0 %v2304
        %2600 = vmatpush2.bf16.msra.mxu0 %v2303
        %2601 = vmatprep.subr.bf16.mxu0 %v2300
        %2602 = vmatpush2.bf16.msra.mxu0 %v2299
        %2603 = vmatprep.subr.bf16.mxu0 %v2296
        %2604 = vmatpush2.bf16.msra.mxu0 %v2295
        %2605 = vmatprep.subr.bf16.mxu0 %v2292
        %2606 = vmatpush2.bf16.msra.mxu0 %v2291
        %2607 = vmatprep.subr.bf16.mxu0 %v2288
        %2608 = vmatpush2.bf16.msra.mxu0 %v2287
        %2609 = vmatprep.subr.bf16.mxu0 %v2284
        %2610 = vmatpush2.bf16.msra.mxu0 %v2283
        %2611 = vmatprep.subr.bf16.mxu0 %v2280
        %2612 = vmatpush2.bf16.msra.mxu0 %v2279
        %2613 = vmatprep.subr.bf16.mxu0 %v2276
        %2614 = vmatpush2.bf16.msra.mxu0 %v2275
        %2615 = vmatprep.mubr.bf16.mxu0 %v1704
        %2616 = vmatmul.mubr.bf16.gmra.mxu0 %v1703
        %v2617 = vpop.f32.mrf.mxu0
        %v2618 = vadd.f32 %v1848, %v2617
        %v2619 = vpop.f32.mrf.mxu0
        %v2620 = vadd.f32 %v1852, %v2619
        %v2621 = vpop.f32.mrf.mxu0
        %v2622 = vadd.f32 %v1848, %v2621
        %v2623 = vpop.f32.mrf.mxu0
        %v2624 = vadd.f32 %v1852, %v2623
        %2625 = vdwg.mxu0
        %2626 = vmatprep.subr.bf16.mxu0 %v2336
        %2627 = vmatpush1.bf16.msra.mxu0 %v2335
        %2628 = vmatprep.subr.bf16.mxu0 %v2332
        %2629 = vmatpush1.bf16.msra.mxu0 %v2331
        %2630 = vmatprep.subr.bf16.mxu0 %v2328
        %2631 = vmatpush1.bf16.msra.mxu0 %v2327
        %2632 = vmatprep.subr.bf16.mxu0 %v2324
        %2633 = vmatpush1.bf16.msra.mxu0 %v2323
        %2634 = vmatprep.subr.bf16.mxu0 %v2320
        %2635 = vmatpush1.bf16.msra.mxu0 %v2319
        %2636 = vmatprep.subr.bf16.mxu0 %v2316
        %2637 = vmatpush1.bf16.msra.mxu0 %v2315
        %2638 = vmatprep.subr.bf16.mxu0 %v2312
        %2639 = vmatpush1.bf16.msra.mxu0 %v2311
        %2640 = vmatprep.subr.bf16.mxu0 %v2308
        %2641 = vmatpush1.bf16.msra.mxu0 %v2307
        %2642 = vmatprep.subr.bf16.mxu0 %v2368
        %2643 = vmatpush2.bf16.msra.mxu0 %v2367
        %2644 = vmatprep.subr.bf16.mxu0 %v2364
        %2645 = vmatpush2.bf16.msra.mxu0 %v2363
        %2646 = vmatprep.subr.bf16.mxu0 %v2360
        %2647 = vmatpush2.bf16.msra.mxu0 %v2359
        %2648 = vmatprep.subr.bf16.mxu0 %v2356
        %2649 = vmatpush2.bf16.msra.mxu0 %v2355
        %2650 = vmatprep.subr.bf16.mxu0 %v2352
        %2651 = vmatpush2.bf16.msra.mxu0 %v2351
        %2652 = vmatprep.subr.bf16.mxu0 %v2348
        %2653 = vmatpush2.bf16.msra.mxu0 %v2347
        %2654 = vmatprep.subr.bf16.mxu0 %v2344
        %2655 = vmatpush2.bf16.msra.mxu0 %v2343
        %2656 = vmatprep.subr.bf16.mxu0 %v2340
        %2657 = vmatpush2.bf16.msra.mxu0 %v2339
        %2658 = vmatprep.mubr.bf16.mxu0 %v1706
        %2659 = vmatmul.mubr.bf16.gmra.mxu0 %v1705
        %v2660 = vpop.f32.mrf.mxu0
        %v2661 = vadd.f32 %v2618, %v2660
        %v2662 = vpop.f32.mrf.mxu0
        %v2663 = vadd.f32 %v2620, %v2662
        %v2664 = vpop.f32.mrf.mxu0
        %v2665 = vadd.f32 %v2622, %v2664
        %v2666 = vpop.f32.mrf.mxu0
        %v2667 = vadd.f32 %v2624, %v2666
        %2668 = vdwg.mxu0
        %v2669 = vmax.f32 %v2575, 0.0
        %v2670 = vmax.f32 %v2577, 0.0
        %v2671 = vmax.f32 %v2661, 0.0
        %v2672 = vmax.f32 %v2663, 0.0
        %v2673 = vmax.f32 %v2579, 0.0
        %v2674 = vmax.f32 %v2581, 0.0
        %v2675 = vmax.f32 %v2665, 0.0
        %v2676 = vmax.f32 %v2667, 0.0
        %v2677 = vpack.c.bf16 %v2673, %v2669
        %v2678 = vpack.c.bf16 %v2674, %v2670
        %v2679 = vpack.c.bf16 %v2675, %v2671
        %v2680 = vpack.c.bf16 %v2676, %v2672
        %v2681 = vld [vmem:[%s367] sm:$0xff]
        %v2682 = vld [vmem:[%s367 + $0x8] sm:$0xf]
        %v2683 = vld [vmem:[%s367 + $0xc] sm:$0xff]
        %v2684 = vld [vmem:[%s367 + $0x14] sm:$0xf]
        %v2685 = vld [vmem:[%s367 + $0x18] sm:$0xff]
        %v2686 = vld [vmem:[%s367 + $0x20] sm:$0xf]
        %v2687 = vld [vmem:[%s367 + $0x24] sm:$0xff]
        %v2688 = vld [vmem:[%s367 + $0x2c] sm:$0xf]
        %v2689 = vld [vmem:[%s367 + $0x30] sm:$0xff]
        %v2690 = vld [vmem:[%s367 + $0x38] sm:$0xf]
        %v2691 = vld [vmem:[%s367 + $0x3c] sm:$0xff]
        %v2692 = vld [vmem:[%s367 + $0x44] sm:$0xf]
        %v2693 = vld [vmem:[%s367 + $0x48] sm:$0xff]
        %v2694 = vld [vmem:[%s367 + $0x50] sm:$0xf]
        %v2695 = vld [vmem:[%s367 + $0x54] sm:$0xff]
        %v2696 = vld [vmem:[%s367 + $0x5c] sm:$0xf]
        %v2697 = vld [vmem:[%s367 + $0x60] sm:$0xff]
        %v2698 = vld [vmem:[%s367 + $0x68] sm:$0xf]
        %v2699 = vld [vmem:[%s367 + $0x6c] sm:$0xff]
        %v2700 = vld [vmem:[%s367 + $0x74] sm:$0xf]
        %v2701 = vld [vmem:[%s367 + $0x78] sm:$0xff]
        %v2702 = vld [vmem:[%s367 + $0x80] sm:$0xf]
        %v2703 = vld [vmem:[%s367 + $0x84] sm:$0xff]
        %v2704 = vld [vmem:[%s367 + $0x8c] sm:$0xf]
        %v2705 = vld [vmem:[%s367 + $0x90] sm:$0xff]
        %v2706 = vld [vmem:[%s367 + $0x98] sm:$0xf]
        %v2707 = vld [vmem:[%s367 + $0x9c] sm:$0xff]
        %v2708 = vld [vmem:[%s367 + $0xa4] sm:$0xf]
        %v2709 = vld [vmem:[%s367 + $0xa8] sm:$0xff]
        %v2710 = vld [vmem:[%s367 + $0xb0] sm:$0xf]
        %v2711 = vld [vmem:[%s367 + $0xb4] sm:$0xff]
        %v2712 = vld [vmem:[%s367 + $0xbc] sm:$0xf]
        %v2713 = vld [vmem:[%s367 + $0xc0] sm:$0xff]
        %v2714 = vld [vmem:[%s367 + $0xc8] sm:$0xf]
        %v2715 = vld [vmem:[%s367 + $0xcc] sm:$0xff]
        %v2716 = vld [vmem:[%s367 + $0xd4] sm:$0xf]
        %v2717 = vld [vmem:[%s367 + $0xd8] sm:$0xff]
        %v2718 = vld [vmem:[%s367 + $0xe0] sm:$0xf]
        %v2719 = vld [vmem:[%s367 + $0xe4] sm:$0xff]
        %v2720 = vld [vmem:[%s367 + $0xec] sm:$0xf]
        %v2721 = vld [vmem:[%s367 + $0xf0] sm:$0xff]
        %v2722 = vld [vmem:[%s367 + $0xf8] sm:$0xf]
        %v2723 = vld [vmem:[%s367 + $0xfc] sm:$0xff]
        %v2724 = vld [vmem:[%s367 + $0x104] sm:$0xf]
        %v2725 = vld [vmem:[%s367 + $0x108] sm:$0xff]
        %v2726 = vld [vmem:[%s367 + $0x110] sm:$0xf]
        %v2727 = vld [vmem:[%s367 + $0x114] sm:$0xff]
        %v2728 = vld [vmem:[%s367 + $0x11c] sm:$0xf]
        %v2729 = vld [vmem:[%s367 + $0x120] sm:$0xff]
        %v2730 = vld [vmem:[%s367 + $0x128] sm:$0xf]
        %v2731 = vld [vmem:[%s367 + $0x12c] sm:$0xff]
        %v2732 = vld [vmem:[%s367 + $0x134] sm:$0xf]
        %v2733 = vld [vmem:[%s367 + $0x138] sm:$0xff]
        %v2734 = vld [vmem:[%s367 + $0x140] sm:$0xf]
        %v2735 = vld [vmem:[%s367 + $0x144] sm:$0xff]
        %v2736 = vld [vmem:[%s367 + $0x14c] sm:$0xf]
        %v2737 = vld [vmem:[%s367 + $0x150] sm:$0xff]
        %v2738 = vld [vmem:[%s367 + $0x158] sm:$0xf]
        %v2739 = vld [vmem:[%s367 + $0x15c] sm:$0xff]
        %v2740 = vld [vmem:[%s367 + $0x164] sm:$0xf]
        %v2741 = vld [vmem:[%s367 + $0x168] sm:$0xff]
        %v2742 = vld [vmem:[%s367 + $0x170] sm:$0xf]
        %v2743 = vld [vmem:[%s367 + $0x174] sm:$0xff]
        %v2744 = vld [vmem:[%s367 + $0x17c] sm:$0xf]
        %v2745 = vld [vmem:[%s367 + $0x180] sm:$0xff]
        %v2746 = vld [vmem:[%s367 + $0x188] sm:$0xf]
        %v2747 = vld [vmem:[%s367 + $0x18c] sm:$0xff]
        %v2748 = vld [vmem:[%s367 + $0x194] sm:$0xf]
        %v2749 = vld [vmem:[%s367 + $0x198] sm:$0xff]
        %v2750 = vld [vmem:[%s367 + $0x1a0] sm:$0xf]
        %v2751 = vld [vmem:[%s367 + $0x1a4] sm:$0xff]
        %v2752 = vld [vmem:[%s367 + $0x1ac] sm:$0xf]
        %v2753 = vld [vmem:[%s367 + $0x1b0] sm:$0xff]
        %v2754 = vld [vmem:[%s367 + $0x1b8] sm:$0xf]
        %v2755 = vld [vmem:[%s367 + $0x1bc] sm:$0xff]
        %v2756 = vld [vmem:[%s367 + $0x1c4] sm:$0xf]
        %v2757 = vld [vmem:[%s367 + $0x1c8] sm:$0xff]
        %v2758 = vld [vmem:[%s367 + $0x1d0] sm:$0xf]
        %v2759 = vld [vmem:[%s367 + $0x1d4] sm:$0xff]
        %v2760 = vld [vmem:[%s367 + $0x1dc] sm:$0xf]
        %v2761 = vld [vmem:[%s367 + $0x1e0] sm:$0xff]
        %v2762 = vld [vmem:[%s367 + $0x1e8] sm:$0xf]
        %v2763 = vld [vmem:[%s367 + $0x1ec] sm:$0xff]
        %v2764 = vld [vmem:[%s367 + $0x1f4] sm:$0xf]
        %v2765 = vld [vmem:[%s367 + $0x1f8] sm:$0xff]
        %v2766 = vld [vmem:[%s367 + $0x200] sm:$0xf]
        %v2767 = vld [vmem:[%s367 + $0x204] sm:$0xff]
        %v2768 = vld [vmem:[%s367 + $0x20c] sm:$0xf]
        %v2769 = vld [vmem:[%s367 + $0x210] sm:$0xff]
        %v2770 = vld [vmem:[%s367 + $0x218] sm:$0xf]
        %v2771 = vld [vmem:[%s367 + $0x21c] sm:$0xff]
        %v2772 = vld [vmem:[%s367 + $0x224] sm:$0xf]
        %v2773 = vld [vmem:[%s367 + $0x228] sm:$0xff]
        %v2774 = vld [vmem:[%s367 + $0x230] sm:$0xf]
        %v2775 = vld [vmem:[%s367 + $0x234] sm:$0xff]
        %v2776 = vld [vmem:[%s367 + $0x23c] sm:$0xf]
        %v2777 = vld [vmem:[%s367 + $0x240] sm:$0xff]
        %v2778 = vld [vmem:[%s367 + $0x248] sm:$0xf]
        %v2779 = vld [vmem:[%s367 + $0x24c] sm:$0xff]
        %v2780 = vld [vmem:[%s367 + $0x254] sm:$0xf]
        %v2781 = vld [vmem:[%s367 + $0x258] sm:$0xff]
        %v2782 = vld [vmem:[%s367 + $0x260] sm:$0xf]
        %v2783 = vld [vmem:[%s367 + $0x264] sm:$0xff]
        %v2784 = vld [vmem:[%s367 + $0x26c] sm:$0xf]
        %v2785 = vld [vmem:[%s367 + $0x270] sm:$0xff]
        %v2786 = vld [vmem:[%s367 + $0x278] sm:$0xf]
        %v2787 = vld [vmem:[%s367 + $0x27c] sm:$0xff]
        %v2788 = vld [vmem:[%s367 + $0x284] sm:$0xf]
        %v2789 = vld [vmem:[%s367 + $0x288] sm:$0xff]
        %v2790 = vld [vmem:[%s367 + $0x290] sm:$0xf]
        %v2791 = vld [vmem:[%s367 + $0x294] sm:$0xff]
        %v2792 = vld [vmem:[%s367 + $0x29c] sm:$0xf]
        %v2793 = vld [vmem:[%s367 + $0x2a0] sm:$0xff]
        %v2794 = vld [vmem:[%s367 + $0x2a8] sm:$0xf]
        %v2795 = vld [vmem:[%s367 + $0x2ac] sm:$0xff]
        %v2796 = vld [vmem:[%s367 + $0x2b4] sm:$0xf]
        %v2797 = vld [vmem:[%s367 + $0x2b8] sm:$0xff]
        %v2798 = vld [vmem:[%s367 + $0x2c0] sm:$0xf]
        %v2799 = vld [vmem:[%s367 + $0x2c4] sm:$0xff]
        %v2800 = vld [vmem:[%s367 + $0x2cc] sm:$0xf]
        %v2801 = vld [vmem:[%s367 + $0x2d0] sm:$0xff]
        %v2802 = vld [vmem:[%s367 + $0x2d8] sm:$0xf]
        %v2803 = vld [vmem:[%s367 + $0x2dc] sm:$0xff]
        %v2804 = vld [vmem:[%s367 + $0x2e4] sm:$0xf]
        %v2805 = vld [vmem:[%s367 + $0x2e8] sm:$0xff]
        %v2806 = vld [vmem:[%s367 + $0x2f0] sm:$0xf]
        %v2807 = vld [vmem:[%s367 + $0x2f4] sm:$0xff]
        %v2808 = vld [vmem:[%s367 + $0x2fc] sm:$0xf]
        %v2809 = vld [vmem:[%s409] sm:$0x7]
        %v2811 = vlaneseq
        %v2812 = vshrl.u32 %v2811, 7
        %v2813 = vsub.s32 0, %v2812
        %v2814 = vrot.slane %v2809, %v2813
        %v2815 = vlaneseq
        %v2816 = vshrl.u32 %v2815, 7
        %v2817 = vsub.s32 1, %v2816
        %v2818 = vrot.slane %v2809, %v2817
        %v2819 = vlaneseq
        %v2820 = vshrl.u32 %v2819, 7
        %v2821 = vsub.s32 2, %v2820
        %v2822 = vrot.slane %v2809, %v2821
        %v2954 = vunpack.c.l.b16 %v2681
        %v2955 = vunpack.c.h.b16 %v2681
        %v2956 = vunpack.c.l.b16 %v2682
        %v2957 = vunpack.c.l.b16 %v2683
        %v2958 = vunpack.c.h.b16 %v2683
        %v2959 = vunpack.c.l.b16 %v2684
        %v2960 = vunpack.c.l.b16 %v2685
        %v2961 = vunpack.c.h.b16 %v2685
        %v2962 = vunpack.c.l.b16 %v2686
        %v2963 = vunpack.c.l.b16 %v2687
        %v2964 = vunpack.c.h.b16 %v2687
        %v2965 = vunpack.c.l.b16 %v2688
        %v2966 = vunpack.c.l.b16 %v2689
        %v2967 = vunpack.c.h.b16 %v2689
        %v2968 = vunpack.c.l.b16 %v2690
        %v2969 = vunpack.c.l.b16 %v2691
        %v2970 = vunpack.c.h.b16 %v2691
        %v2971 = vunpack.c.l.b16 %v2692
        %v2972 = vunpack.c.l.b16 %v2693
        %v2973 = vunpack.c.h.b16 %v2693
        %v2974 = vunpack.c.l.b16 %v2694
        %v2975 = vunpack.c.l.b16 %v2695
        %v2976 = vunpack.c.h.b16 %v2695
        %v2977 = vunpack.c.l.b16 %v2696
        %v2978 = vunpack.c.l.b16 %v2697
        %v2979 = vunpack.c.h.b16 %v2697
        %v2980 = vunpack.c.l.b16 %v2698
        %v2981 = vunpack.c.l.b16 %v2699
        %v2982 = vunpack.c.h.b16 %v2699
        %v2983 = vunpack.c.l.b16 %v2700
        %v2984 = vunpack.c.l.b16 %v2701
        %v2985 = vunpack.c.h.b16 %v2701
        %v2986 = vunpack.c.l.b16 %v2702
        %v2987 = vunpack.c.l.b16 %v2703
        %v2988 = vunpack.c.h.b16 %v2703
        %v2989 = vunpack.c.l.b16 %v2704
        %v2990 = vunpack.c.l.b16 %v2705
        %v2991 = vunpack.c.h.b16 %v2705
        %v2992 = vunpack.c.l.b16 %v2706
        %v2993 = vunpack.c.l.b16 %v2707
        %v2994 = vunpack.c.h.b16 %v2707
        %v2995 = vunpack.c.l.b16 %v2708
        %v2996 = vunpack.c.l.b16 %v2709
        %v2997 = vunpack.c.h.b16 %v2709
        %v2998 = vunpack.c.l.b16 %v2710
        %v2999 = vunpack.c.l.b16 %v2711
        %v3000 = vunpack.c.h.b16 %v2711
        %v3001 = vunpack.c.l.b16 %v2712
        %v3002 = vunpack.c.l.b16 %v2713
        %v3003 = vunpack.c.h.b16 %v2713
        %v3004 = vunpack.c.l.b16 %v2714
        %v3005 = vunpack.c.l.b16 %v2715
        %v3006 = vunpack.c.h.b16 %v2715
        %v3007 = vunpack.c.l.b16 %v2716
        %v3008 = vunpack.c.l.b16 %v2717
        %v3009 = vunpack.c.h.b16 %v2717
        %v3010 = vunpack.c.l.b16 %v2718
        %v3011 = vunpack.c.l.b16 %v2719
        %v3012 = vunpack.c.h.b16 %v2719
        %v3013 = vunpack.c.l.b16 %v2720
        %v3014 = vunpack.c.l.b16 %v2721
        %v3015 = vunpack.c.h.b16 %v2721
        %v3016 = vunpack.c.l.b16 %v2722
        %v3017 = vunpack.c.l.b16 %v2723
        %v3018 = vunpack.c.h.b16 %v2723
        %v3019 = vunpack.c.l.b16 %v2724
        %v3020 = vunpack.c.l.b16 %v2725
        %v3021 = vunpack.c.h.b16 %v2725
        %v3022 = vunpack.c.l.b16 %v2726
        %v3023 = vunpack.c.l.b16 %v2727
        %v3024 = vunpack.c.h.b16 %v2727
        %v3025 = vunpack.c.l.b16 %v2728
        %v3026 = vunpack.c.l.b16 %v2729
        %v3027 = vunpack.c.h.b16 %v2729
        %v3028 = vunpack.c.l.b16 %v2730
        %v3029 = vunpack.c.l.b16 %v2731
        %v3030 = vunpack.c.h.b16 %v2731
        %v3031 = vunpack.c.l.b16 %v2732
        %v3032 = vunpack.c.l.b16 %v2733
        %v3033 = vunpack.c.h.b16 %v2733
        %v3034 = vunpack.c.l.b16 %v2734
        %v3035 = vunpack.c.l.b16 %v2735
        %v3036 = vunpack.c.h.b16 %v2735
        %v3037 = vunpack.c.l.b16 %v2736
        %v3038 = vunpack.c.l.b16 %v2737
        %v3039 = vunpack.c.h.b16 %v2737
        %v3040 = vunpack.c.l.b16 %v2738
        %v3041 = vunpack.c.l.b16 %v2739
        %v3042 = vunpack.c.h.b16 %v2739
        %v3043 = vunpack.c.l.b16 %v2740
        %v3044 = vunpack.c.l.b16 %v2741
        %v3045 = vunpack.c.h.b16 %v2741
        %v3046 = vunpack.c.l.b16 %v2742
        %v3047 = vunpack.c.l.b16 %v2743
        %v3048 = vunpack.c.h.b16 %v2743
        %v3049 = vunpack.c.l.b16 %v2744
        %v3050 = vunpack.c.l.b16 %v2745
        %v3051 = vunpack.c.h.b16 %v2745
        %v3052 = vunpack.c.l.b16 %v2746
        %v3053 = vunpack.c.l.b16 %v2747
        %v3054 = vunpack.c.h.b16 %v2747
        %v3055 = vunpack.c.l.b16 %v2748
        %v3056 = vunpack.c.l.b16 %v2749
        %v3057 = vunpack.c.h.b16 %v2749
        %v3058 = vunpack.c.l.b16 %v2750
        %v3059 = vunpack.c.l.b16 %v2751
        %v3060 = vunpack.c.h.b16 %v2751
        %v3061 = vunpack.c.l.b16 %v2752
        %v3062 = vunpack.c.l.b16 %v2753
        %v3063 = vunpack.c.h.b16 %v2753
        %v3064 = vunpack.c.l.b16 %v2754
        %v3065 = vunpack.c.l.b16 %v2755
        %v3066 = vunpack.c.h.b16 %v2755
        %v3067 = vunpack.c.l.b16 %v2756
        %v3068 = vunpack.c.l.b16 %v2757
        %v3069 = vunpack.c.h.b16 %v2757
        %v3070 = vunpack.c.l.b16 %v2758
        %v3071 = vunpack.c.l.b16 %v2759
        %v3072 = vunpack.c.h.b16 %v2759
        %v3073 = vunpack.c.l.b16 %v2760
        %v3074 = vunpack.c.l.b16 %v2761
        %v3075 = vunpack.c.h.b16 %v2761
        %v3076 = vunpack.c.l.b16 %v2762
        %v3077 = vunpack.c.l.b16 %v2763
        %v3078 = vunpack.c.h.b16 %v2763
        %v3079 = vunpack.c.l.b16 %v2764
        %v3080 = vunpack.c.l.b16 %v2765
        %v3081 = vunpack.c.h.b16 %v2765
        %v3082 = vunpack.c.l.b16 %v2766
        %v3083 = vunpack.c.l.b16 %v2767
        %v3084 = vunpack.c.h.b16 %v2767
        %v3085 = vunpack.c.l.b16 %v2768
        %v3086 = vunpack.c.l.b16 %v2769
        %v3087 = vunpack.c.h.b16 %v2769
        %v3088 = vunpack.c.l.b16 %v2770
        %v3089 = vunpack.c.l.b16 %v2771
        %v3090 = vunpack.c.h.b16 %v2771
        %v3091 = vunpack.c.l.b16 %v2772
        %v3092 = vunpack.c.l.b16 %v2773
        %v3093 = vunpack.c.h.b16 %v2773
        %v3094 = vunpack.c.l.b16 %v2774
        %v3095 = vunpack.c.l.b16 %v2775
        %v3096 = vunpack.c.h.b16 %v2775
        %v3097 = vunpack.c.l.b16 %v2776
        %v3098 = vunpack.c.l.b16 %v2777
        %v3099 = vunpack.c.h.b16 %v2777
        %v3100 = vunpack.c.l.b16 %v2778
        %v3101 = vunpack.c.l.b16 %v2779
        %v3102 = vunpack.c.h.b16 %v2779
        %v3103 = vunpack.c.l.b16 %v2780
        %v3104 = vunpack.c.l.b16 %v2781
        %v3105 = vunpack.c.h.b16 %v2781
        %v3106 = vunpack.c.l.b16 %v2782
        %v3107 = vunpack.c.l.b16 %v2783
        %v3108 = vunpack.c.h.b16 %v2783
        %v3109 = vunpack.c.l.b16 %v2784
        %v3110 = vunpack.c.l.b16 %v2785
        %v3111 = vunpack.c.h.b16 %v2785
        %v3112 = vunpack.c.l.b16 %v2786
        %v3113 = vunpack.c.l.b16 %v2787
        %v3114 = vunpack.c.h.b16 %v2787
        %v3115 = vunpack.c.l.b16 %v2788
        %v3116 = vunpack.c.l.b16 %v2789
        %v3117 = vunpack.c.h.b16 %v2789
        %v3118 = vunpack.c.l.b16 %v2790
        %v3119 = vunpack.c.l.b16 %v2791
        %v3120 = vunpack.c.h.b16 %v2791
        %v3121 = vunpack.c.l.b16 %v2792
        %v3122 = vunpack.c.l.b16 %v2793
        %v3123 = vunpack.c.h.b16 %v2793
        %v3124 = vunpack.c.l.b16 %v2794
        %v3125 = vunpack.c.l.b16 %v2795
        %v3126 = vunpack.c.h.b16 %v2795
        %v3127 = vunpack.c.l.b16 %v2796
        %v3128 = vunpack.c.l.b16 %v2797
        %v3129 = vunpack.c.h.b16 %v2797
        %v3130 = vunpack.c.l.b16 %v2798
        %v3131 = vunpack.c.l.b16 %v2799
        %v3132 = vunpack.c.h.b16 %v2799
        %v3133 = vunpack.c.l.b16 %v2800
        %v3134 = vunpack.c.l.b16 %v2801
        %v3135 = vunpack.c.h.b16 %v2801
        %v3136 = vunpack.c.l.b16 %v2802
        %v3137 = vunpack.c.l.b16 %v2803
        %v3138 = vunpack.c.h.b16 %v2803
        %v3139 = vunpack.c.l.b16 %v2804
        %v3140 = vunpack.c.l.b16 %v2805
        %v3141 = vunpack.c.h.b16 %v2805
        %v3142 = vunpack.c.l.b16 %v2806
        %v3143 = vunpack.c.l.b16 %v2807
        %v3144 = vunpack.c.h.b16 %v2807
        %v3145 = vunpack.c.l.b16 %v2808
        %v3146 = vpack.c.b16 %v2957, %v2954
        %v3147 = vpack.c.b16 %v2958, %v2955
        %v3148 = vpack.c.b16 %v2959, %v2956
        %v3149 = vpack.c.b16 %v2963, %v2960
        %v3150 = vpack.c.b16 %v2964, %v2961
        %v3151 = vpack.c.b16 %v2965, %v2962
        %v3152 = vpack.c.b16 %v2969, %v2966
        %v3153 = vpack.c.b16 %v2970, %v2967
        %v3154 = vpack.c.b16 %v2971, %v2968
        %v3155 = vpack.c.b16 %v2975, %v2972
        %v3156 = vpack.c.b16 %v2976, %v2973
        %v3157 = vpack.c.b16 %v2977, %v2974
        %v3158 = vpack.c.b16 %v2981, %v2978
        %v3159 = vpack.c.b16 %v2982, %v2979
        %v3160 = vpack.c.b16 %v2983, %v2980
        %v3161 = vpack.c.b16 %v2987, %v2984
        %v3162 = vpack.c.b16 %v2988, %v2985
        %v3163 = vpack.c.b16 %v2989, %v2986
        %v3164 = vpack.c.b16 %v2993, %v2990
        %v3165 = vpack.c.b16 %v2994, %v2991
        %v3166 = vpack.c.b16 %v2995, %v2992
        %v3167 = vpack.c.b16 %v2999, %v2996
        %v3168 = vpack.c.b16 %v3000, %v2997
        %v3169 = vpack.c.b16 %v3001, %v2998
        %v3170 = vpack.c.b16 %v3005, %v3002
        %v3171 = vpack.c.b16 %v3006, %v3003
        %v3172 = vpack.c.b16 %v3007, %v3004
        %v3173 = vpack.c.b16 %v3011, %v3008
        %v3174 = vpack.c.b16 %v3012, %v3009
        %v3175 = vpack.c.b16 %v3013, %v3010
        %v3176 = vpack.c.b16 %v3017, %v3014
        %v3177 = vpack.c.b16 %v3018, %v3015
        %v3178 = vpack.c.b16 %v3019, %v3016
        %v3179 = vpack.c.b16 %v3023, %v3020
        %v3180 = vpack.c.b16 %v3024, %v3021
        %v3181 = vpack.c.b16 %v3025, %v3022
        %v3182 = vpack.c.b16 %v3029, %v3026
        %v3183 = vpack.c.b16 %v3030, %v3027
        %v3184 = vpack.c.b16 %v3031, %v3028
        %v3185 = vpack.c.b16 %v3035, %v3032
        %v3186 = vpack.c.b16 %v3036, %v3033
        %v3187 = vpack.c.b16 %v3037, %v3034
        %v3188 = vpack.c.b16 %v3041, %v3038
        %v3189 = vpack.c.b16 %v3042, %v3039
        %v3190 = vpack.c.b16 %v3043, %v3040
        %v3191 = vpack.c.b16 %v3047, %v3044
        %v3192 = vpack.c.b16 %v3048, %v3045
        %v3193 = vpack.c.b16 %v3049, %v3046
        %v3194 = vpack.c.b16 %v3053, %v3050
        %v3195 = vpack.c.b16 %v3054, %v3051
        %v3196 = vpack.c.b16 %v3055, %v3052
        %v3197 = vpack.c.b16 %v3059, %v3056
        %v3198 = vpack.c.b16 %v3060, %v3057
        %v3199 = vpack.c.b16 %v3061, %v3058
        %v3200 = vpack.c.b16 %v3065, %v3062
        %v3201 = vpack.c.b16 %v3066, %v3063
        %v3202 = vpack.c.b16 %v3067, %v3064
        %v3203 = vpack.c.b16 %v3071, %v3068
        %v3204 = vpack.c.b16 %v3072, %v3069
        %v3205 = vpack.c.b16 %v3073, %v3070
        %v3206 = vpack.c.b16 %v3077, %v3074
        %v3207 = vpack.c.b16 %v3078, %v3075
        %v3208 = vpack.c.b16 %v3079, %v3076
        %v3209 = vpack.c.b16 %v3083, %v3080
        %v3210 = vpack.c.b16 %v3084, %v3081
        %v3211 = vpack.c.b16 %v3085, %v3082
        %v3212 = vpack.c.b16 %v3089, %v3086
        %v3213 = vpack.c.b16 %v3090, %v3087
        %v3214 = vpack.c.b16 %v3091, %v3088
        %v3215 = vpack.c.b16 %v3095, %v3092
        %v3216 = vpack.c.b16 %v3096, %v3093
        %v3217 = vpack.c.b16 %v3097, %v3094
        %v3218 = vpack.c.b16 %v3101, %v3098
        %v3219 = vpack.c.b16 %v3102, %v3099
        %v3220 = vpack.c.b16 %v3103, %v3100
        %v3221 = vpack.c.b16 %v3107, %v3104
        %v3222 = vpack.c.b16 %v3108, %v3105
        %v3223 = vpack.c.b16 %v3109, %v3106
        %v3224 = vpack.c.b16 %v3113, %v3110
        %v3225 = vpack.c.b16 %v3114, %v3111
        %v3226 = vpack.c.b16 %v3115, %v3112
        %v3227 = vpack.c.b16 %v3119, %v3116
        %v3228 = vpack.c.b16 %v3120, %v3117
        %v3229 = vpack.c.b16 %v3121, %v3118
        %v3230 = vpack.c.b16 %v3125, %v3122
        %v3231 = vpack.c.b16 %v3126, %v3123
        %v3232 = vpack.c.b16 %v3127, %v3124
        %v3233 = vpack.c.b16 %v3131, %v3128
        %v3234 = vpack.c.b16 %v3132, %v3129
        %v3235 = vpack.c.b16 %v3133, %v3130
        %v3236 = vpack.c.b16 %v3137, %v3134
        %v3237 = vpack.c.b16 %v3138, %v3135
        %v3238 = vpack.c.b16 %v3139, %v3136
        %v3239 = vpack.c.b16 %v3143, %v3140
        %v3240 = vpack.c.b16 %v3144, %v3141
        %v3241 = vpack.c.b16 %v3145, %v3142
        %3338 = vmatprep.subr.bf16.mxu0 %v3168
        %3339 = vmatpush1.bf16.msra.mxu0 %v3167
        %3340 = vmatprep.subr.bf16.mxu0 %v3165
        %3341 = vmatpush1.bf16.msra.mxu0 %v3164
        %3342 = vmatprep.subr.bf16.mxu0 %v3162
        %3343 = vmatpush1.bf16.msra.mxu0 %v3161
        %3344 = vmatprep.subr.bf16.mxu0 %v3159
        %3345 = vmatpush1.bf16.msra.mxu0 %v3158
        %3346 = vmatprep.subr.bf16.mxu0 %v3156
        %3347 = vmatpush1.bf16.msra.mxu0 %v3155
        %3348 = vmatprep.subr.bf16.mxu0 %v3153
        %3349 = vmatpush1.bf16.msra.mxu0 %v3152
        %3350 = vmatprep.subr.bf16.mxu0 %v3150
        %3351 = vmatpush1.bf16.msra.mxu0 %v3149
        %3352 = vmatprep.subr.bf16.mxu0 %v3147
        %3353 = vmatpush1.bf16.msra.mxu0 %v3146
        %3354 = vmatprep.subr.bf16.mxu0 %v3192
        %3355 = vmatpush2.bf16.msra.mxu0 %v3191
        %3356 = vmatprep.subr.bf16.mxu0 %v3189
        %3357 = vmatpush2.bf16.msra.mxu0 %v3188
        %3358 = vmatprep.subr.bf16.mxu0 %v3186
        %3359 = vmatpush2.bf16.msra.mxu0 %v3185
        %3360 = vmatprep.subr.bf16.mxu0 %v3183
        %3361 = vmatpush2.bf16.msra.mxu0 %v3182
        %3362 = vmatprep.subr.bf16.mxu0 %v3180
        %3363 = vmatpush2.bf16.msra.mxu0 %v3179
        %3364 = vmatprep.subr.bf16.mxu0 %v3177
        %3365 = vmatpush2.bf16.msra.mxu0 %v3176
        %3366 = vmatprep.subr.bf16.mxu0 %v3174
        %3367 = vmatpush2.bf16.msra.mxu0 %v3173
        %3368 = vmatprep.subr.bf16.mxu0 %v3171
        %3369 = vmatpush2.bf16.msra.mxu0 %v3170
        %3370 = vmatprep.mubr.bf16.mxu0 %v2678
        %3371 = vmatmul.mubr.bf16.gmra.mxu0 %v2677
        %v3372 = vpop.f32.mrf.mxu0
        %v3373 = vadd.f32 %v2814, %v3372
        %v3374 = vpop.f32.mrf.mxu0
        %v3375 = vadd.f32 %v2818, %v3374
        %v3376 = vpop.f32.mrf.mxu0
        %v3377 = vadd.f32 %v2814, %v3376
        %v3378 = vpop.f32.mrf.mxu0
        %v3379 = vadd.f32 %v2818, %v3378
        %3380 = vdwg.mxu0
        %3381 = vmatprep.subr.bf16.mxu0 %v3216
        %3382 = vmatpush1.bf16.msra.mxu0 %v3215
        %3383 = vmatprep.subr.bf16.mxu0 %v3213
        %3384 = vmatpush1.bf16.msra.mxu0 %v3212
        %3385 = vmatprep.subr.bf16.mxu0 %v3210
        %3386 = vmatpush1.bf16.msra.mxu0 %v3209
        %3387 = vmatprep.subr.bf16.mxu0 %v3207
        %3388 = vmatpush1.bf16.msra.mxu0 %v3206
        %3389 = vmatprep.subr.bf16.mxu0 %v3204
        %3390 = vmatpush1.bf16.msra.mxu0 %v3203
        %3391 = vmatprep.subr.bf16.mxu0 %v3201
        %3392 = vmatpush1.bf16.msra.mxu0 %v3200
        %3393 = vmatprep.subr.bf16.mxu0 %v3198
        %3394 = vmatpush1.bf16.msra.mxu0 %v3197
        %3395 = vmatprep.subr.bf16.mxu0 %v3195
        %3396 = vmatpush1.bf16.msra.mxu0 %v3194
        %3397 = vmatprep.subr.bf16.mxu0 %v3240
        %3398 = vmatpush2.bf16.msra.mxu0 %v3239
        %3399 = vmatprep.subr.bf16.mxu0 %v3237
        %3400 = vmatpush2.bf16.msra.mxu0 %v3236
        %3401 = vmatprep.subr.bf16.mxu0 %v3234
        %3402 = vmatpush2.bf16.msra.mxu0 %v3233
        %3403 = vmatprep.subr.bf16.mxu0 %v3231
        %3404 = vmatpush2.bf16.msra.mxu0 %v3230
        %3405 = vmatprep.subr.bf16.mxu0 %v3228
        %3406 = vmatpush2.bf16.msra.mxu0 %v3227
        %3407 = vmatprep.subr.bf16.mxu0 %v3225
        %3408 = vmatpush2.bf16.msra.mxu0 %v3224
        %3409 = vmatprep.subr.bf16.mxu0 %v3222
        %3410 = vmatpush2.bf16.msra.mxu0 %v3221
        %3411 = vmatprep.subr.bf16.mxu0 %v3219
        %3412 = vmatpush2.bf16.msra.mxu0 %v3218
        %3413 = vmatprep.mubr.bf16.mxu0 %v2680
        %3414 = vmatmul.mubr.bf16.gmra.mxu0 %v2679
        %v3415 = vpop.f32.mrf.mxu0
        %v3416 = vadd.f32 %v3373, %v3415
        %v3417 = vpop.f32.mrf.mxu0
        %v3418 = vadd.f32 %v3375, %v3417
        %v3419 = vpop.f32.mrf.mxu0
        %v3420 = vadd.f32 %v3377, %v3419
        %v3421 = vpop.f32.mrf.mxu0
        %v3422 = vadd.f32 %v3379, %v3421
        %3423 = vdwg.mxu0
        %3424 = vmatprep.subr.bf16.mxu0 0
        %3425 = vmatpush1.bf16.msra.mxu0 %v3169
        %3426 = vmatprep.subr.bf16.mxu0 0
        %3427 = vmatpush1.bf16.msra.mxu0 %v3166
        %3428 = vmatprep.subr.bf16.mxu0 0
        %3429 = vmatpush1.bf16.msra.mxu0 %v3163
        %3430 = vmatprep.subr.bf16.mxu0 0
        %3431 = vmatpush1.bf16.msra.mxu0 %v3160
        %3432 = vmatprep.subr.bf16.mxu0 0
        %3433 = vmatpush1.bf16.msra.mxu0 %v3157
        %3434 = vmatprep.subr.bf16.mxu0 0
        %3435 = vmatpush1.bf16.msra.mxu0 %v3154
        %3436 = vmatprep.subr.bf16.mxu0 0
        %3437 = vmatpush1.bf16.msra.mxu0 %v3151
        %3438 = vmatprep.subr.bf16.mxu0 0
        %3439 = vmatpush1.bf16.msra.mxu0 %v3148
        %3440 = vmatprep.subr.bf16.mxu0 0
        %3441 = vmatpush2.bf16.msra.mxu0 %v3193
        %3442 = vmatprep.subr.bf16.mxu0 0
        %3443 = vmatpush2.bf16.msra.mxu0 %v3190
        %3444 = vmatprep.subr.bf16.mxu0 0
        %3445 = vmatpush2.bf16.msra.mxu0 %v3187
        %3446 = vmatprep.subr.bf16.mxu0 0
        %3447 = vmatpush2.bf16.msra.mxu0 %v3184
        %3448 = vmatprep.subr.bf16.mxu0 0
        %3449 = vmatpush2.bf16.msra.mxu0 %v3181
        %3450 = vmatprep.subr.bf16.mxu0 0
        %3451 = vmatpush2.bf16.msra.mxu0 %v3178
        %3452 = vmatprep.subr.bf16.mxu0 0
        %3453 = vmatpush2.bf16.msra.mxu0 %v3175
        %3454 = vmatprep.subr.bf16.mxu0 0
        %3455 = vmatpush2.bf16.msra.mxu0 %v3172
        %3456 = vmatprep.mubr.bf16.mxu0 %v2678
        %3457 = vmatmul.mubr.bf16.gmra.mxu0 %v2677
        %v3458 = vpop.f32.mrf.mxu0
        %v3459 = vadd.f32 %v2822, %v3458
        %v3460 = vpop.f32.mrf.mxu0
        %v3461 = vpop.f32.mrf.mxu0
        %v3462 = vadd.f32 %v2822, %v3461
        %v3463 = vpop.f32.mrf.mxu0
        %3464 = vdwg.mxu0
        %3465 = vmatprep.subr.bf16.mxu0 0
        %3466 = vmatpush1.bf16.msra.mxu0 %v3217
        %3467 = vmatprep.subr.bf16.mxu0 0
        %3468 = vmatpush1.bf16.msra.mxu0 %v3214
        %3469 = vmatprep.subr.bf16.mxu0 0
        %3470 = vmatpush1.bf16.msra.mxu0 %v3211
        %3471 = vmatprep.subr.bf16.mxu0 0
        %3472 = vmatpush1.bf16.msra.mxu0 %v3208
        %3473 = vmatprep.subr.bf16.mxu0 0
        %3474 = vmatpush1.bf16.msra.mxu0 %v3205
        %3475 = vmatprep.subr.bf16.mxu0 0
        %3476 = vmatpush1.bf16.msra.mxu0 %v3202
        %3477 = vmatprep.subr.bf16.mxu0 0
        %3478 = vmatpush1.bf16.msra.mxu0 %v3199
        %3479 = vmatprep.subr.bf16.mxu0 0
        %3480 = vmatpush1.bf16.msra.mxu0 %v3196
        %3481 = vmatprep.subr.bf16.mxu0 0
        %3482 = vmatpush2.bf16.msra.mxu0 %v3241
        %3483 = vmatprep.subr.bf16.mxu0 0
        %3484 = vmatpush2.bf16.msra.mxu0 %v3238
        %3485 = vmatprep.subr.bf16.mxu0 0
        %3486 = vmatpush2.bf16.msra.mxu0 %v3235
        %3487 = vmatprep.subr.bf16.mxu0 0
        %3488 = vmatpush2.bf16.msra.mxu0 %v3232
        %3489 = vmatprep.subr.bf16.mxu0 0
        %3490 = vmatpush2.bf16.msra.mxu0 %v3229
        %3491 = vmatprep.subr.bf16.mxu0 0
        %3492 = vmatpush2.bf16.msra.mxu0 %v3226
        %3493 = vmatprep.subr.bf16.mxu0 0
        %3494 = vmatpush2.bf16.msra.mxu0 %v3223
        %3495 = vmatprep.subr.bf16.mxu0 0
        %3496 = vmatpush2.bf16.msra.mxu0 %v3220
        %3497 = vmatprep.mubr.bf16.mxu0 %v2680
        %3498 = vmatmul.mubr.bf16.gmra.mxu0 %v2679
        %v3499 = vpop.f32.mrf.mxu0
        %v3500 = vadd.f32 %v3459, %v3499
        %v3501 = vpop.f32.mrf.mxu0
        %v3502 = vpop.f32.mrf.mxu0
        %v3503 = vadd.f32 %v3462, %v3502
        %v3504 = vpop.f32.mrf.mxu0
        %3505 = vdwg.mxu0
        %3506 = vst [vmem:[%s404] sm:$0xff] %v3416
        %3507 = vst [vmem:[%s404 + $0x8] sm:$0xff] %v3418
        %3508 = vst [vmem:[%s404 + $0x10] sm:$0xff] %v3500
        %3509 = vst [vmem:[%s404 + $0x18] sm:$0xff] %v3420
        %3510 = vst [vmem:[%s404 + $0x20] sm:$0xff] %v3422
        %3511 = vst [vmem:[%s404 + $0x28] sm:$0xff] %v3503
        %s3512 = sand.u32 %s232, 1
        %s3513 = sand.u32 %s232, 1
        %s3514 = smul.addr %s3513, 48
        %s3515 = scalar_lea.vmem [#allocation9], %s3514
        // Predicated region
        $region73: #{decoder_forward.1} parent=55 // pred_check
          %p3516 = pneg %p242
        $region74: #{decoder_forward.1} parent=55 // pred_check_branch
          %3518 = sbr.rel (%p3516) target = $region76
        $region75: #{decoder_forward.1} parent=55 // pred_region
          %s3519 = smul.u32 3, %s25
          %s3520 = smul.addr %s3519, 8
          %s3521 = scalar_lea.vmem %s9, %s3520
          // Predicated region
          $region77: #{decoder_forward.1} parent=75 // pred_check
            _
          $region78: #{decoder_forward.1} parent=75 // pred_check_branch
            %3523 = sbr.rel (0) target = $region80
          $region79: #{decoder_forward.1} parent=75 // pred_region
            // Predicated region
            $region81: #{decoder_forward.1} parent=79 // pred_check
              _
            $region82: #{decoder_forward.1} parent=79 // pred_check_branch
              %3525 = sbr.rel (0) target = $region84
            $region83: #{decoder_forward.1} parent=79 // pred_region
              loop: start=0, step=1, limit=1
              $region85: #{decoder_forward.1} parent=83 // loop_pre_header
                _
              $region86: #{decoder_forward.1} parent=83 // loop_header
                %s3527 = sphi 0, %s3531
                %p3528 = scmp.ge.s32.totalorder %s3527, 1
                %s3532 = sphi %s3515, %s3515
                %s3533 = sphi %s3521, %s3521
              $region87: #{decoder_forward.1} parent=83 // loop_header_branch
                %3530 = sbr.rel (%p3528) target = $region91
              $region88: #{decoder_forward.1} parent=83 // loop_body
                %v3534 = vld [vmem:[%s3532] sm:$0xff]
                %3535 = vst [vmem:[%s3533] sm:$0xff] %v3534
                %v3536 = vld [vmem:[%s3532 + $0x8] sm:$0xff]
                %3537 = vst [vmem:[%s3533 + $0x8] sm:$0xff] %v3536
                %v3538 = vld [vmem:[%s3532 + $0x10] sm:$0xff]
                %3539 = vst [vmem:[%s3533 + $0x10] sm:$0xff] %v3538
                %v3540 = vld [vmem:[%s3532 + $0x18] sm:$0xff]
                %3541 = vst [vmem:[%s3533 + $0x30] sm:$0xff] %v3540
                %v3542 = vld [vmem:[%s3532 + $0x20] sm:$0xff]
                %3543 = vst [vmem:[%s3533 + $0x38] sm:$0xff] %v3542
                %v3544 = vld [vmem:[%s3532 + $0x28] sm:$0xff]
                %3545 = vst [vmem:[%s3533 + $0x40] sm:$0xff] %v3544
              $region89: #{decoder_forward.1} parent=83 // loop_footer
                %s3531 = sadd.s32 1, %s3527
              $region90: #{decoder_forward.1} parent=83 // loop_footer_branch
                %3526 = sbr.rel target = $region86
              $region91: #{decoder_forward.1} parent=83 // loop_exit
                _
            $region84: #{decoder_forward.1} parent=79 // pred_fallthru
              _
            // Predicated region
            $region92: #{decoder_forward.1} parent=79 // pred_check
              _
            $region93: #{decoder_forward.1} parent=79 // pred_check_branch
              %3547 = sbr.rel target = $region95
            $region94: #{decoder_forward.1} parent=79 // pred_region
              _
            $region95: #{decoder_forward.1} parent=79 // pred_fallthru
              _
          $region80: #{decoder_forward.1} parent=75 // pred_fallthru
            _
          %3548 = vnop
        $region76: #{decoder_forward.1} parent=55 // pred_fallthru
          _
      $region56: #{decoder_forward.1} parent=5 // pred_fallthru
        _
      %p3549 = scmp.le.s32.totalorder 2, %s20
      // Predicated region
      $region96: #{decoder_forward.1} parent=5 // pred_check
        %p3550 = pneg %p3549
      $region97: #{decoder_forward.1} parent=5 // pred_check_branch
        %3552 = sbr.rel (%p3550) target = $region99
      $region98: #{decoder_forward.1} parent=5 // pred_region
        %s3553 = ssub.s32 %s20, 2
        // Predicated region
        $region100: #{decoder_forward.1} parent=98 // pred_check
          %p3554 = pneg %p248
        $region101: #{decoder_forward.1} parent=98 // pred_check_branch
          %3556 = sbr.rel (%p3554) target = $region103
        $region102: #{decoder_forward.1} parent=98 // pred_region
          %s3557 = sand.u32 %s233, 1
          %s3558 = sand.u32 %s233, 1
          %s3559 = smul.addr %s3558, 48
          %s3560 = scalar_lea.vmem [#allocation9], %s3559
        $region103: #{decoder_forward.1} parent=98 // pred_fallthru
          _
      $region99: #{decoder_forward.1} parent=5 // pred_fallthru
        _
    $region6: #{decoder_forward.1} parent=1 // loop_footer
      %s24 = sadd.s32 1, %s20
    $region7: #{decoder_forward.1} parent=1 // loop_footer_branch
      %19 = sbr.rel target = $region3
    $region8: #{decoder_forward.1} parent=1 // loop_exit
      _
    %3561 = vsyncpa [#allocation3], 1
    %s3562 = scalar_lea.sflag [#allocation3], 1
    %3563 = vsyncpa %s3562, 1
    %3564 = vsyncpa [#allocation5], 1
    %3565 = vsyncpa [#allocation8], 1
    %s3566 = scalar_lea.sflag [#allocation8], 1
    %3567 = vsyncpa %s3566, 1

</llo_original>
